<compile_context>
chip_gen: v5e
topology: v5e:2x2
jax: 0.10.0
libtpu: 0.0.40
codegen_flags: <defaults>
</compile_context>

<pallas_src>
import numpy as np
from functools import partial

import jax
import jax.numpy as jnp
from jax import lax
from jax.experimental import pallas as pl
from jax.experimental.pallas import tpu as pltpu


# ------------------------- Pallas kernel -------------------------

def _make_kernel(cfg):
    """Build the decoder kernel for a static (T, N, N_pad, NT_pad, ...) config."""
    T, N, N_pad, NT_pad, E, V, H, vocab = cfg
    TN = T * N_pad          # number of (time, batch) rows in the recurrence
    G = 4 * H               # LSTM gate width
    # static row offsets into the packed parameter buffers (see __init__)
    EMB0, MLP0, IHA0, IHB0 = 0, 128, 256, 384          # bf16 buffer (wpack)
    FC0 = IHB0 + V
    HH0, BR0, BM0, BF0 = 0, H, H + 8, H + 16            # f32 buffer (fpack)

    def kernel(idx_ref, vis_ref, pmat_ref, wpack_ref, fpack_ref, out_ref):
        # ---- unpack parameters: static, tile-aligned sublane slices (2 DMAs total)
        w_emb  = wpack_ref[EMB0:EMB0 + 128, :]     # (vocab,128) bf16, cols >= E zero
        w_mlp  = wpack_ref[MLP0:MLP0 + 128, :]     # (128,128)  bf16, rows>=E / cols>=V zero
        w_ih_a = wpack_ref[IHA0:IHA0 + 128, :]     # (128,128)  bf16, rows >= V zero
        w_ih_b = wpack_ref[IHB0:IHB0 + V, :]       # (V, 4H)    bf16
        w_fc   = wpack_ref[FC0:FC0 + H, :]         # (H, vocab) bf16
        w_hh   = fpack_ref[HH0:HH0 + H, :]         # (H, 4H)    f32
        b_rnn8 = fpack_ref[BR0:BR0 + 8, :]         # (8, 4H)    f32, 8-sublane resident
        b_mlp8 = fpack_ref[BM0:BM0 + 8, :]         # (8, 128)   f32, cols >= V zero
        b_fc8  = fpack_ref[BF0:BF0 + 8, :]         # (8, vocab) f32

        labels = idx_ref[0:TN, :]                  # (TN,1)   int32 time-major token ids
        rec    = idx_ref[TN:TN + N_pad, :]         # (N_pad,1) int32 recover_ixs, -1 on pad rows

        # ---- embedding gather as a one-hot MXU matmul (no XLA gather outside)
        onehot = jnp.where(
            labels == lax.broadcasted_iota(jnp.int32, (TN, vocab), 1),
            1.0, 0.0).astype(jnp.bfloat16)                                # (TN, vocab)
        emb = jnp.dot(onehot, w_emb, preferred_element_type=jnp.float32)  # (TN, 128)

        # ---- MLP: ReLU(emb @ W_mlp + b_mlp), batch*time parallel, bf16 MXU / f32 acc
        mlp = jnp.maximum(
            jnp.dot(emb.astype(jnp.bfloat16), w_mlp,
                    preferred_element_type=jnp.float32)
            + jnp.tile(b_mlp8, (TN // 8, 1)),
            0.0)                                                           # (TN, 128)

        # ---- input-to-hidden gate pre-activations for the whole sequence
        gx = (jnp.dot(mlp.astype(jnp.bfloat16), w_ih_a,
                      preferred_element_type=jnp.float32)
              + jnp.tile(b_rnn8, (TN // 8, 1)))                            # (TN, 4H)

        # ---- visual-feature injection (t == 0 only).  Row b takes
        #      vis[recover_ixs[b]] (reproduces the module's unsorted-vis /
        #      sorted-labels pairing).  N is tiny, so gather with an unrolled
        #      compare/select; padded batch rows (rec == -1) stay zero.
        # TODO(synk): switch to a one-hot matmul gather once N grows.
        vis = vis_ref[...]                                                 # (N, V) f32
        visg = jnp.zeros((N_pad, V), jnp.float32)
        for j in range(N):
            visg = visg + jnp.where(rec == j, vis[j:j + 1, :], 0.0)
        gx_vis = jnp.dot(visg.astype(jnp.bfloat16), w_ih_b,
                         preferred_element_type=jnp.float32)               # (N_pad, 4H)

        # ---- LSTM recurrence: statically unrolled, f32 elementwise (v5e-safe)
        # TODO(synk): hold W_hh resident in the MXU across the unrolled loop via
        # pltpu.matmul_push_rhs / matmul_acc_lhs / matmul_pop.
        h = jnp.zeros((N_pad, H), jnp.float32)
        c = jnp.zeros((N_pad, H), jnp.float32)
        hs_bm = jnp.zeros((NT_pad, H), jnp.float32)    # batch-major hidden states
        for t in range(T):
            g = gx[t * N_pad:(t + 1) * N_pad, :]
            if t == 0:
                g = g + gx_vis                          # vis injection hoisted to t=0
            g = g + jnp.dot(h, w_hh, preferred_element_type=jnp.float32)
            if G == 128:
                # whole (N_pad, 4H) gate tile is a single vreg: 2 EUP pushes / step
                sig = jax.nn.sigmoid(g)
                th = jnp.tanh(g)
                i_g, f_g, o_g = sig[:, 0:H], sig[:, H:2 * H], sig[:, 3 * H:4 * H]
                g_g = th[:, 2 * H:3 * H]
            else:
                # guard (perf review): for 4H != 128 push only the lanes needed
                i_g = jax.nn.sigmoid(g[:, 0:H])
                f_g = jax.nn.sigmoid(g[:, H:2 * H])
                g_g = jnp.tanh(g[:, 2 * H:3 * H])
                o_g = jax.nn.sigmoid(g[:, 3 * H:4 * H])
            c = f_g * c + i_g * g_g
            h = o_g * jnp.tanh(c)
            # Scatter this step's hidden rows straight into batch-major output
            # order on the MXU.  pmat also applies the pack/pad_packed length
            # mask and drops padded batch rows, so there is no separate mask
            # multiply, no hs concat, and no post-kernel transpose / recover
            # gather.  This small matmul overlaps the step's EUP latency.
            p_t = pmat_ref[t * NT_pad:(t + 1) * NT_pad, :]                 # (NT_pad, N_pad) bf16
            hs_bm = hs_bm + jnp.dot(p_t, h.astype(jnp.bfloat16),
                                    preferred_element_type=jnp.float32)

        # ---- final vocab projection: lane-dense (vocab == 128) unmasked store
        out_ref[...] = (jnp.dot(hs_bm.astype(jnp.bfloat16), w_fc,
                                preferred_element_type=jnp.float32)
                        + jnp.tile(b_fc8, (NT_pad // 8, 1)))

    return kernel


def _full_spec(shape):
    zeros = (0,) * len(shape)
    return pl.BlockSpec(shape, lambda i: zeros)


@partial(jax.jit, static_argnames=("cfg",))
def _device_forward(idx, vis, pmat, wpack, fpack, *, cfg):
    """Exactly one pallas_call; no pre-/post-kernel XLA ops at these sizes."""
    T, N, N_pad, NT_pad, E, V, H, vocab = cfg
    inputs = (idx, vis, pmat, wpack, fpack)
    out = pl.pallas_call(
        _make_kernel(cfg),
        out_shape=jax.ShapeDtypeStruct((NT_pad, vocab), jnp.float32),
        grid=(1,),
        in_specs=[_full_spec(x.shape) for x in inputs],
        out_specs=_full_spec((NT_pad, vocab)),
        compiler_params=pltpu.CompilerParams(
            dimension_semantics=("arbitrary",)),
    )(*inputs)
    if NT_pad != N * T:
        out = out[:N * T]     # drop alignment padding rows (not hit when N*T % 16 == 0)
    return out


# ------------------------- Module wrapper -------------------------

class RNNDecoderPallas:
    def __init__(self, opt, key):
        self.vocab_size = opt["vocab_size"]
        self.E = opt["word_embedding_size"]
        self.V = opt["word_vec_size"]
        self.H = opt["rnn_hidden_size"]
        assert opt["rnn_type"] == "lstm" and opt["rnn_num_layers"] == 1
        assert opt["decode_bidirectional"] == 0
        # TODO(synk): multi-layer / bidirectional RNN variants not implemented.
        assert self.vocab_size == 128, "packed-weight layout assumes vocab == 128"
        assert self.E <= 128 and self.V <= 128 and 4 * self.H <= 128
        assert self.V % 16 == 0 and self.H % 8 == 0

        ks = jax.random.split(key, 10)

        def init(k, shape, scale=0.1):
            return np.asarray(scale * jax.random.normal(k, shape, jnp.float32))

        V, H, E, vocab = self.V, self.H, self.E, self.vocab_size
        w_emb  = init(ks[0], (vocab, E))
        w_mlp  = init(ks[1], (E, V))
        b_mlp  = init(ks[2], (V,))
        w_ih_a = init(ks[3], (V, 4 * H))   # W_ih rows for the mlp half of the rnn input
        w_ih_b = init(ks[4], (V, 4 * H))   # W_ih rows for the vis half of the rnn input
        w_hh   = init(ks[5], (H, 4 * H))
        b_rnn  = init(ks[6], (4 * H,))     # b_ih + b_hh fused
        w_fc   = init(ks[7], (H, vocab))
        b_fc   = init(ks[8], (vocab,))
        # slr_mlp from __init__ is never used in forward -> omitted.

        # ---- parameter packing: 2 buffers -> 2 input DMAs instead of 9.
        # bf16 matmul weights, zero-padded to 128 lanes so the kernel never
        # needs to lane-slice a packed region.
        wpack = np.zeros((384 + V + H, 128), np.float32)
        wpack[0:vocab, 0:E]               = w_emb
        wpack[128:128 + E, 0:V]           = w_mlp
        wpack[256:256 + V, 0:4 * H]       = w_ih_a
        wpack[384:384 + V, 0:4 * H]       = w_ih_b
        wpack[384 + V:384 + V + H, 0:vocab] = w_fc
        self.wpack = jnp.asarray(wpack, jnp.bfloat16)

        # f32 recurrent weight + biases pre-broadcast to 8 sublanes (perf review).
        fpack = np.zeros((H + 24, 128), np.float32)
        fpack[0:H, 0:4 * H]        = w_hh
        fpack[H:H + 8, 0:4 * H]    = b_rnn[None, :]
        fpack[H + 8:H + 16, 0:V]   = b_mlp[None, :]
        fpack[H + 16:H + 24, 0:vocab] = b_fc[None, :]
        self.fpack = jnp.asarray(fpack, jnp.float32)

    def forward(self, vis_att_fuse, enc_labels):
        # enc_labels: (N, T) int32, vis_att_fuse: (N, V) f32
        labels_np = np.asarray(enc_labels)
        N, T = labels_np.shape

        # variable_lengths bookkeeping: identical numpy ops (and tie-breaking)
        # to the PyTorch module, so recover_ixs reproduces its quirk exactly.
        input_lengths = (labels_np != 0).sum(1)
        input_lengths_list = input_lengths.tolist()
        sort_ixs = np.argsort(input_lengths_list)[::-1].tolist()
        s2r = {s: r for r, s in enumerate(sort_ixs)}
        recover_ixs = np.array([s2r[s] for s in range(N)], dtype=np.int32)
        assert int(max(input_lengths_list)) == T

        N_pad = max(8, ((N + 7) // 8) * 8)          # sublane-pad the batch
        NT_pad = ((N * T + 15) // 16) * 16          # bf16-tile-aligned output rows

        # int32 side data in one buffer: time-major token ids + recover indices.
        labels_tm = np.zeros((T, N_pad), np.int32)
        labels_tm[:, :N] = labels_np.T
        rec_eff = np.full((N_pad,), -1, np.int32)
        rec_eff[:N] = recover_ixs
        idx = np.concatenate([labels_tm.reshape(-1), rec_eff]).reshape(-1, 1)

        # Output-placement matrix built from the *original-order* lengths.  At
        # step t it scatters hidden row b to output row b*T + t, applies the
        # pack/pad_packed length mask (rows past length stay 0, so fc yields
        # b_fc like the reference) and drops the padded batch rows.  This
        # replaces the old (T*N_pad, H) f32 mask input, the post-kernel
        # transpose and the recover gather.
        pmat = np.zeros((T * NT_pad, N_pad), np.float32)
        for i in range(N):
            for t in range(int(input_lengths_list[i])):
                pmat[t * NT_pad + i * T + t, i] = 1.0

        cfg = (T, N, N_pad, NT_pad, self.E, self.V, self.H, self.vocab_size)
        return _device_forward(jnp.asarray(idx, jnp.int32),
                               jnp.asarray(vis_att_fuse, jnp.float32),
                               jnp.asarray(pmat, jnp.bfloat16),
                               self.wpack, self.fpack, cfg=cfg)


# ------------------------- main -------------------------

if __name__ == "__main__":
    opt = dict(variable_lengths=1, vocab_size=128, word_embedding_size=64,
               word_vec_size=32, rnn_hidden_size=32, decode_bidirectional=0,
               word_drop_out=0.0, rnn_drop_out=0.0, rnn_num_layers=1,
               rnn_type="lstm")

    N, T = 4, 8
    key = jax.random.PRNGKey(0)
    k_mod, k_lab, k_vis = jax.random.split(key, 3)

    model = RNNDecoderPallas(opt, k_mod)

    # labels in [1, vocab), then zero-pad tails; first sequence has full length
    labels = np.array(jax.random.randint(k_lab, (N, T), 1, opt["vocab_size"]),
                      dtype=np.int32)                  # writable host copy
    lengths = [T, 5, 3, 6]
    for b, L in enumerate(lengths):
        labels[b, L:] = 0

    vis_att_fuse = 0.1 * jax.random.normal(k_vis, (N, opt["word_vec_size"]),
                                           jnp.float32)

    out = model.forward(vis_att_fuse, labels)          # (N*T, vocab_size)
    out = jax.block_until_ready(out)
    assert out.shape == (N * T, opt["vocab_size"])
    assert bool(jnp.all(jnp.isfinite(out)))
    print("KERNEL_OK")
</pallas_src>

<mosaic_0001>
module attributes {stable_mosaic.version = 11 : i64} {
  func.func @kernel(%arg0: i32, %arg1: memref<72x1xi32, #tpu.memory_space<vmem>>, %arg2: memref<4x32xf32, #tpu.memory_space<vmem>>, %arg3: memref<256x8xbf16, #tpu.memory_space<vmem>>, %arg4: memref<448x128xbf16, #tpu.memory_space<vmem>>, %arg5: memref<56x128xf32, #tpu.memory_space<vmem>>, %arg6: memref<32x128xf32, #tpu.memory_space<vmem>>) attributes {dimension_semantics = [#tpu.dimension_semantics<arbitrary>], iteration_bounds = array<i64: 1>, scalar_prefetch = 0 : i64, scratch_operands = 0 : i64, tpu.core_type = #tpu.core_type<tc>, window_params = [{pipeline_mode = #tpu.pipeline_mode<synchronous>, transform_indices = @transform_0, window_bounds = array<i64: 72, 1>}, {pipeline_mode = #tpu.pipeline_mode<synchronous>, transform_indices = @transform_1, window_bounds = array<i64: 4, 32>}, {pipeline_mode = #tpu.pipeline_mode<synchronous>, transform_indices = @transform_2, window_bounds = array<i64: 256, 8>}, {pipeline_mode = #tpu.pipeline_mode<synchronous>, transform_indices = @transform_3, window_bounds = array<i64: 448, 128>}, {pipeline_mode = #tpu.pipeline_mode<synchronous>, transform_indices = @transform_4, window_bounds = array<i64: 56, 128>}, {pipeline_mode = #tpu.pipeline_mode<synchronous>, transform_indices = @transform_5, window_bounds = array<i64: 32, 128>}]} {
    %c0 = arith.constant 0 : index
    %c0_0 = arith.constant 0 : index
    %0 = vector.load %arg4[%c0, %c0_0] : memref<448x128xbf16, #tpu.memory_space<vmem>>, vector<128x128xbf16>
    %c128 = arith.constant 128 : index
    %c0_1 = arith.constant 0 : index
    %1 = vector.load %arg4[%c128, %c0_1] : memref<448x128xbf16, #tpu.memory_space<vmem>>, vector<128x128xbf16>
    %c256 = arith.constant 256 : index
    %c0_2 = arith.constant 0 : index
    %2 = vector.load %arg4[%c256, %c0_2] : memref<448x128xbf16, #tpu.memory_space<vmem>>, vector<128x128xbf16>
    %c384 = arith.constant 384 : index
    %c0_3 = arith.constant 0 : index
    %3 = vector.load %arg4[%c384, %c0_3] : memref<448x128xbf16, #tpu.memory_space<vmem>>, vector<32x128xbf16>
    %c416 = arith.constant 416 : index
    %c0_4 = arith.constant 0 : index
    %4 = vector.load %arg4[%c416, %c0_4] : memref<448x128xbf16, #tpu.memory_space<vmem>>, vector<32x128xbf16>
    %c0_5 = arith.constant 0 : index
    %c0_6 = arith.constant 0 : index
    %5 = vector.load %arg5[%c0_5, %c0_6] : memref<56x128xf32, #tpu.memory_space<vmem>>, vector<32x128xf32>
    %c32 = arith.constant 32 : index
    %c0_7 = arith.constant 0 : index
    %6 = vector.load %arg5[%c32, %c0_7] : memref<56x128xf32, #tpu.memory_space<vmem>>, vector<8x128xf32>
    %c40 = arith.constant 40 : index
    %c0_8 = arith.constant 0 : index
    %7 = vector.load %arg5[%c40, %c0_8] : memref<56x128xf32, #tpu.memory_space<vmem>>, vector<8x128xf32>
    %c48 = arith.constant 48 : index
    %c0_9 = arith.constant 0 : index
    %8 = vector.load %arg5[%c48, %c0_9] : memref<56x128xf32, #tpu.memory_space<vmem>>, vector<8x128xf32>
    %c0_10 = arith.constant 0 : index
    %c0_11 = arith.constant 0 : index
    %9 = vector.load %arg1[%c0_10, %c0_11] : memref<72x1xi32, #tpu.memory_space<vmem>>, vector<64x1xi32>
    %c64 = arith.constant 64 : index
    %c0_12 = arith.constant 0 : index
    %10 = vector.load %arg1[%c64, %c0_12] : memref<72x1xi32, #tpu.memory_space<vmem>>, vector<8x1xi32>
    %11 = tpu.iota {dimensions = array<i32: 1>} : vector<64x128xi32>
    %12 = vector.broadcast %9 : vector<64x1xi32> to vector<64x128xi32>
    %13 = arith.cmpi eq, %12, %11 : vector<64x128xi32>
    %cst = arith.constant 1.000000e+00 : f32
    %cst_13 = arith.constant 0.000000e+00 : f32
    %14 = vector.broadcast %cst : f32 to vector<64x128xf32>
    %15 = vector.broadcast %cst_13 : f32 to vector<64x128xf32>
    %16 = arith.select %13, %14, %15 : vector<64x128xi1>, vector<64x128xf32>
    %17 = arith.truncf %16 : vector<64x128xf32> to vector<64x128xbf16>
    %cst_14 = arith.constant dense<0.000000e+00> : vector<64x128xf32>
    %18 = tpu.matmul %17, %0, %cst_14 {dimension_numbers = #tpu.dot_dimension_numbers<[1], [0], [0], [1], [0, 0, 1, 1], [], []>} : vector<64x128xbf16>, vector<128x128xbf16>, vector<64x128xf32> -> vector<64x128xf32>
    %19 = arith.truncf %18 : vector<64x128xf32> to vector<64x128xbf16>
    %cst_15 = arith.constant dense<0.000000e+00> : vector<64x128xf32>
    %20 = tpu.matmul %19, %1, %cst_15 {dimension_numbers = #tpu.dot_dimension_numbers<[1], [0], [0], [1], [0, 0, 1, 1], [], []>} : vector<64x128xbf16>, vector<128x128xbf16>, vector<64x128xf32> -> vector<64x128xf32>
    %21 = tpu.concatenate %7, %7, %7, %7, %7, %7, %7, %7 in 0 : vector<8x128xf32>, vector<8x128xf32>, vector<8x128xf32>, vector<8x128xf32>, vector<8x128xf32>, vector<8x128xf32>, vector<8x128xf32>, vector<8x128xf32> -> vector<64x128xf32>
    %22 = arith.addf %20, %21 : vector<64x128xf32>
    %cst_16 = arith.constant 0.000000e+00 : f32
    %23 = vector.broadcast %cst_16 : f32 to vector<64x128xf32>
    %24 = arith.maximumf %22, %23 : vector<64x128xf32>
    %25 = arith.truncf %24 : vector<64x128xf32> to vector<64x128xbf16>
    %cst_17 = arith.constant dense<0.000000e+00> : vector<64x128xf32>
    %26 = tpu.matmul %25, %2, %cst_17 {dimension_numbers = #tpu.dot_dimension_numbers<[1], [0], [0], [1], [0, 0, 1, 1], [], []>} : vector<64x128xbf16>, vector<128x128xbf16>, vector<64x128xf32> -> vector<64x128xf32>
    %27 = tpu.concatenate %6, %6, %6, %6, %6, %6, %6, %6 in 0 : vector<8x128xf32>, vector<8x128xf32>, vector<8x128xf32>, vector<8x128xf32>, vector<8x128xf32>, vector<8x128xf32>, vector<8x128xf32>, vector<8x128xf32> -> vector<64x128xf32>
    %28 = arith.addf %26, %27 : vector<64x128xf32>
    %c0_18 = arith.constant 0 : index
    %c0_19 = arith.constant 0 : index
    %29 = vector.load %arg2[%c0_18, %c0_19] : memref<4x32xf32, #tpu.memory_space<vmem>>, vector<4x32xf32>
    %cst_20 = arith.constant 0.000000e+00 : f32
    %30 = vector.broadcast %cst_20 : f32 to vector<8x32xf32>
    %c0_i32 = arith.constant 0 : i32
    %31 = vector.broadcast %c0_i32 : i32 to vector<8x1xi32>
    %32 = arith.cmpi eq, %10, %31 : vector<8x1xi32>
    %33 = vector.extract_strided_slice %29 {offsets = [0, 0], sizes = [1, 32], strides = [1, 1]} : vector<4x32xf32> to vector<1x32xf32>
    %cst_21 = arith.constant 0.000000e+00 : f32
    %34 = vector.shape_cast %32 : vector<8x1xi1> to vector<8x1xi1>
    %35 = vector.broadcast %34 : vector<8x1xi1> to vector<8x32xi1>
    %36 = vector.shape_cast %33 : vector<1x32xf32> to vector<1x32xf32>
    %37 = vector.broadcast %36 : vector<1x32xf32> to vector<8x32xf32>
    %38 = vector.broadcast %cst_21 : f32 to vector<8x32xf32>
    %39 = arith.select %35, %37, %38 : vector<8x32xi1>, vector<8x32xf32>
    %40 = arith.addf %30, %39 : vector<8x32xf32>
    %c1_i32 = arith.constant 1 : i32
    %41 = vector.broadcast %c1_i32 : i32 to vector<8x1xi32>
    %42 = arith.cmpi eq, %10, %41 : vector<8x1xi32>
    %43 = vector.extract_strided_slice %29 {offsets = [1, 0], sizes = [1, 32], strides = [1, 1]} : vector<4x32xf32> to vector<1x32xf32>
    %cst_22 = arith.constant 0.000000e+00 : f32
    %44 = vector.shape_cast %42 : vector<8x1xi1> to vector<8x1xi1>
    %45 = vector.broadcast %44 : vector<8x1xi1> to vector<8x32xi1>
    %46 = vector.shape_cast %43 : vector<1x32xf32> to vector<1x32xf32>
    %47 = vector.broadcast %46 : vector<1x32xf32> to vector<8x32xf32>
    %48 = vector.broadcast %cst_22 : f32 to vector<8x32xf32>
    %49 = arith.select %45, %47, %48 : vector<8x32xi1>, vector<8x32xf32>
    %50 = arith.addf %40, %49 : vector<8x32xf32>
    %c2_i32 = arith.constant 2 : i32
    %51 = vector.broadcast %c2_i32 : i32 to vector<8x1xi32>
    %52 = arith.cmpi eq, %10, %51 : vector<8x1xi32>
    %53 = vector.extract_strided_slice %29 {offsets = [2, 0], sizes = [1, 32], strides = [1, 1]} : vector<4x32xf32> to vector<1x32xf32>
    %cst_23 = arith.constant 0.000000e+00 : f32
    %54 = vector.shape_cast %52 : vector<8x1xi1> to vector<8x1xi1>
    %55 = vector.broadcast %54 : vector<8x1xi1> to vector<8x32xi1>
    %56 = vector.shape_cast %53 : vector<1x32xf32> to vector<1x32xf32>
    %57 = vector.broadcast %56 : vector<1x32xf32> to vector<8x32xf32>
    %58 = vector.broadcast %cst_23 : f32 to vector<8x32xf32>
    %59 = arith.select %55, %57, %58 : vector<8x32xi1>, vector<8x32xf32>
    %60 = arith.addf %50, %59 : vector<8x32xf32>
    %c3_i32 = arith.constant 3 : i32
    %61 = vector.broadcast %c3_i32 : i32 to vector<8x1xi32>
    %62 = arith.cmpi eq, %10, %61 : vector<8x1xi32>
    %63 = vector.extract_strided_slice %29 {offsets = [3, 0], sizes = [1, 32], strides = [1, 1]} : vector<4x32xf32> to vector<1x32xf32>
    %cst_24 = arith.constant 0.000000e+00 : f32
    %64 = vector.shape_cast %62 : vector<8x1xi1> to vector<8x1xi1>
    %65 = vector.broadcast %64 : vector<8x1xi1> to vector<8x32xi1>
    %66 = vector.shape_cast %63 : vector<1x32xf32> to vector<1x32xf32>
    %67 = vector.broadcast %66 : vector<1x32xf32> to vector<8x32xf32>
    %68 = vector.broadcast %cst_24 : f32 to vector<8x32xf32>
    %69 = arith.select %65, %67, %68 : vector<8x32xi1>, vector<8x32xf32>
    %70 = arith.addf %60, %69 : vector<8x32xf32>
    %71 = arith.truncf %70 : vector<8x32xf32> to vector<8x32xbf16>
    %cst_25 = arith.constant dense<0.000000e+00> : vector<8x128xf32>
    %72 = tpu.matmul %71, %3, %cst_25 {dimension_numbers = #tpu.dot_dimension_numbers<[1], [0], [0], [1], [0, 0, 1, 1], [], []>} : vector<8x32xbf16>, vector<32x128xbf16>, vector<8x128xf32> -> vector<8x128xf32>
    %cst_26 = arith.constant 0.000000e+00 : f32
    %73 = vector.broadcast %cst_26 : f32 to vector<8x32xf32>
    %cst_27 = arith.constant 0.000000e+00 : f32
    %74 = vector.broadcast %cst_27 : f32 to vector<8x32xf32>
    %cst_28 = arith.constant 0.000000e+00 : f32
    %75 = vector.broadcast %cst_28 : f32 to vector<32x32xf32>
    %76 = vector.extract_strided_slice %28 {offsets = [0, 0], sizes = [8, 128], strides = [1, 1]} : vector<64x128xf32> to vector<8x128xf32>
    %77 = arith.addf %76, %72 : vector<8x128xf32>
    %cst_29 = arith.constant dense<0.000000e+00> : vector<8x128xf32>
    %78 = tpu.matmul %73, %5, %cst_29 {dimension_numbers = #tpu.dot_dimension_numbers<[1], [0], [0], [1], [0, 0, 1, 1], [], []>} : vector<8x32xf32>, vector<32x128xf32>, vector<8x128xf32> -> vector<8x128xf32>
    %79 = arith.addf %77, %78 : vector<8x128xf32>
    %80 = arith.negf %79 : vector<8x128xf32>
    %81 = math.exp %80 : vector<8x128xf32>
    %cst_30 = arith.constant 1.000000e+00 : f32
    %82 = vector.broadcast %cst_30 : f32 to vector<8x128xf32>
    %83 = arith.addf %82, %81 : vector<8x128xf32>
    %84 = arith.divf %82, %83 : vector<8x128xf32>
    %85 = math.tanh %79 : vector<8x128xf32>
    %86 = vector.extract_strided_slice %84 {offsets = [0, 0], sizes = [8, 32], strides = [1, 1]} : vector<8x128xf32> to vector<8x32xf32>
    %87 = vector.extract_strided_slice %84 {offsets = [0, 32], sizes = [8, 32], strides = [1, 1]} : vector<8x128xf32> to vector<8x32xf32>
    %88 = vector.extract_strided_slice %84 {offsets = [0, 96], sizes = [8, 32], strides = [1, 1]} : vector<8x128xf32> to vector<8x32xf32>
    %89 = vector.extract_strided_slice %85 {offsets = [0, 64], sizes = [8, 32], strides = [1, 1]} : vector<8x128xf32> to vector<8x32xf32>
    %90 = arith.mulf %87, %74 : vector<8x32xf32>
    %91 = arith.mulf %86, %89 : vector<8x32xf32>
    %92 = arith.addf %90, %91 : vector<8x32xf32>
    %93 = math.tanh %92 : vector<8x32xf32>
    %94 = arith.mulf %88, %93 : vector<8x32xf32>
    %c0_31 = arith.constant 0 : index
    %c0_32 = arith.constant 0 : index
    %95 = vector.load %arg3[%c0_31, %c0_32] : memref<256x8xbf16, #tpu.memory_space<vmem>>, vector<32x8xbf16>
    %96 = arith.truncf %94 : vector<8x32xf32> to vector<8x32xbf16>
    %cst_33 = arith.constant dense<0.000000e+00> : vector<32x32xf32>
    %97 = tpu.matmul %95, %96, %cst_33 {dimension_numbers = #tpu.dot_dimension_numbers<[1], [0], [0], [1], [0, 0, 1, 1], [], []>} : vector<32x8xbf16>, vector<8x32xbf16>, vector<32x32xf32> -> vector<32x32xf32>
    %98 = arith.addf %75, %97 : vector<32x32xf32>
    %99 = vector.extract_strided_slice %28 {offsets = [8, 0], sizes = [8, 128], strides = [1, 1]} : vector<64x128xf32> to vector<8x128xf32>
    %cst_34 = arith.constant dense<0.000000e+00> : vector<8x128xf32>
    %100 = tpu.matmul %94, %5, %cst_34 {dimension_numbers = #tpu.dot_dimension_numbers<[1], [0], [0], [1], [0, 0, 1, 1], [], []>} : vector<8x32xf32>, vector<32x128xf32>, vector<8x128xf32> -> vector<8x128xf32>
    %101 = arith.addf %99, %100 : vector<8x128xf32>
    %102 = arith.negf %101 : vector<8x128xf32>
    %103 = math.exp %102 : vector<8x128xf32>
    %cst_35 = arith.constant 1.000000e+00 : f32
    %104 = vector.broadcast %cst_35 : f32 to vector<8x128xf32>
    %105 = arith.addf %104, %103 : vector<8x128xf32>
    %106 = arith.divf %104, %105 : vector<8x128xf32>
    %107 = math.tanh %101 : vector<8x128xf32>
    %108 = vector.extract_strided_slice %106 {offsets = [0, 0], sizes = [8, 32], strides = [1, 1]} : vector<8x128xf32> to vector<8x32xf32>
    %109 = vector.extract_strided_slice %106 {offsets = [0, 32], sizes = [8, 32], strides = [1, 1]} : vector<8x128xf32> to vector<8x32xf32>
    %110 = vector.extract_strided_slice %106 {offsets = [0, 96], sizes = [8, 32], strides = [1, 1]} : vector<8x128xf32> to vector<8x32xf32>
    %111 = vector.extract_strided_slice %107 {offsets = [0, 64], sizes = [8, 32], strides = [1, 1]} : vector<8x128xf32> to vector<8x32xf32>
    %112 = arith.mulf %109, %92 : vector<8x32xf32>
    %113 = arith.mulf %108, %111 : vector<8x32xf32>
    %114 = arith.addf %112, %113 : vector<8x32xf32>
    %115 = math.tanh %114 : vector<8x32xf32>
    %116 = arith.mulf %110, %115 : vector<8x32xf32>
    %c32_36 = arith.constant 32 : index
    %c0_37 = arith.constant 0 : index
    %117 = vector.load %arg3[%c32_36, %c0_37] : memref<256x8xbf16, #tpu.memory_space<vmem>>, vector<32x8xbf16>
    %118 = arith.truncf %116 : vector<8x32xf32> to vector<8x32xbf16>
    %cst_38 = arith.constant dense<0.000000e+00> : vector<32x32xf32>
    %119 = tpu.matmul %117, %118, %cst_38 {dimension_numbers = #tpu.dot_dimension_numbers<[1], [0], [0], [1], [0, 0, 1, 1], [], []>} : vector<32x8xbf16>, vector<8x32xbf16>, vector<32x32xf32> -> vector<32x32xf32>
    %120 = arith.addf %98, %119 : vector<32x32xf32>
    %121 = vector.extract_strided_slice %28 {offsets = [16, 0], sizes = [8, 128], strides = [1, 1]} : vector<64x128xf32> to vector<8x128xf32>
    %cst_39 = arith.constant dense<0.000000e+00> : vector<8x128xf32>
    %122 = tpu.matmul %116, %5, %cst_39 {dimension_numbers = #tpu.dot_dimension_numbers<[1], [0], [0], [1], [0, 0, 1, 1], [], []>} : vector<8x32xf32>, vector<32x128xf32>, vector<8x128xf32> -> vector<8x128xf32>
    %123 = arith.addf %121, %122 : vector<8x128xf32>
    %124 = arith.negf %123 : vector<8x128xf32>
    %125 = math.exp %124 : vector<8x128xf32>
    %cst_40 = arith.constant 1.000000e+00 : f32
    %126 = vector.broadcast %cst_40 : f32 to vector<8x128xf32>
    %127 = arith.addf %126, %125 : vector<8x128xf32>
    %128 = arith.divf %126, %127 : vector<8x128xf32>
    %129 = math.tanh %123 : vector<8x128xf32>
    %130 = vector.extract_strided_slice %128 {offsets = [0, 0], sizes = [8, 32], strides = [1, 1]} : vector<8x128xf32> to vector<8x32xf32>
    %131 = vector.extract_strided_slice %128 {offsets = [0, 32], sizes = [8, 32], strides = [1, 1]} : vector<8x128xf32> to vector<8x32xf32>
    %132 = vector.extract_strided_slice %128 {offsets = [0, 96], sizes = [8, 32], strides = [1, 1]} : vector<8x128xf32> to vector<8x32xf32>
    %133 = vector.extract_strided_slice %129 {offsets = [0, 64], sizes = [8, 32], strides = [1, 1]} : vector<8x128xf32> to vector<8x32xf32>
    %134 = arith.mulf %131, %114 : vector<8x32xf32>
    %135 = arith.mulf %130, %133 : vector<8x32xf32>
    %136 = arith.addf %134, %135 : vector<8x32xf32>
    %137 = math.tanh %136 : vector<8x32xf32>
    %138 = arith.mulf %132, %137 : vector<8x32xf32>
    %c64_41 = arith.constant 64 : index
    %c0_42 = arith.constant 0 : index
    %139 = vector.load %arg3[%c64_41, %c0_42] : memref<256x8xbf16, #tpu.memory_space<vmem>>, vector<32x8xbf16>
    %140 = arith.truncf %138 : vector<8x32xf32> to vector<8x32xbf16>
    %cst_43 = arith.constant dense<0.000000e+00> : vector<32x32xf32>
    %141 = tpu.matmul %139, %140, %cst_43 {dimension_numbers = #tpu.dot_dimension_numbers<[1], [0], [0], [1], [0, 0, 1, 1], [], []>} : vector<32x8xbf16>, vector<8x32xbf16>, vector<32x32xf32> -> vector<32x32xf32>
    %142 = arith.addf %120, %141 : vector<32x32xf32>
    %143 = vector.extract_strided_slice %28 {offsets = [24, 0], sizes = [8, 128], strides = [1, 1]} : vector<64x128xf32> to vector<8x128xf32>
    %cst_44 = arith.constant dense<0.000000e+00> : vector<8x128xf32>
    %144 = tpu.matmul %138, %5, %cst_44 {dimension_numbers = #tpu.dot_dimension_numbers<[1], [0], [0], [1], [0, 0, 1, 1], [], []>} : vector<8x32xf32>, vector<32x128xf32>, vector<8x128xf32> -> vector<8x128xf32>
    %145 = arith.addf %143, %144 : vector<8x128xf32>
    %146 = arith.negf %145 : vector<8x128xf32>
    %147 = math.exp %146 : vector<8x128xf32>
    %cst_45 = arith.constant 1.000000e+00 : f32
    %148 = vector.broadcast %cst_45 : f32 to vector<8x128xf32>
    %149 = arith.addf %148, %147 : vector<8x128xf32>
    %150 = arith.divf %148, %149 : vector<8x128xf32>
    %151 = math.tanh %145 : vector<8x128xf32>
    %152 = vector.extract_strided_slice %150 {offsets = [0, 0], sizes = [8, 32], strides = [1, 1]} : vector<8x128xf32> to vector<8x32xf32>
    %153 = vector.extract_strided_slice %150 {offsets = [0, 32], sizes = [8, 32], strides = [1, 1]} : vector<8x128xf32> to vector<8x32xf32>
    %154 = vector.extract_strided_slice %150 {offsets = [0, 96], sizes = [8, 32], strides = [1, 1]} : vector<8x128xf32> to vector<8x32xf32>
    %155 = vector.extract_strided_slice %151 {offsets = [0, 64], sizes = [8, 32], strides = [1, 1]} : vector<8x128xf32> to vector<8x32xf32>
    %156 = arith.mulf %153, %136 : vector<8x32xf32>
    %157 = arith.mulf %152, %155 : vector<8x32xf32>
    %158 = arith.addf %156, %157 : vector<8x32xf32>
    %159 = math.tanh %158 : vector<8x32xf32>
    %160 = arith.mulf %154, %159 : vector<8x32xf32>
    %c96 = arith.constant 96 : index
    %c0_46 = arith.constant 0 : index
    %161 = vector.load %arg3[%c96, %c0_46] : memref<256x8xbf16, #tpu.memory_space<vmem>>, vector<32x8xbf16>
    %162 = arith.truncf %160 : vector<8x32xf32> to vector<8x32xbf16>
    %cst_47 = arith.constant dense<0.000000e+00> : vector<32x32xf32>
    %163 = tpu.matmul %161, %162, %cst_47 {dimension_numbers = #tpu.dot_dimension_numbers<[1], [0], [0], [1], [0, 0, 1, 1], [], []>} : vector<32x8xbf16>, vector<8x32xbf16>, vector<32x32xf32> -> vector<32x32xf32>
    %164 = arith.addf %142, %163 : vector<32x32xf32>
    %165 = vector.extract_strided_slice %28 {offsets = [32, 0], sizes = [8, 128], strides = [1, 1]} : vector<64x128xf32> to vector<8x128xf32>
    %cst_48 = arith.constant dense<0.000000e+00> : vector<8x128xf32>
    %166 = tpu.matmul %160, %5, %cst_48 {dimension_numbers = #tpu.dot_dimension_numbers<[1], [0], [0], [1], [0, 0, 1, 1], [], []>} : vector<8x32xf32>, vector<32x128xf32>, vector<8x128xf32> -> vector<8x128xf32>
    %167 = arith.addf %165, %166 : vector<8x128xf32>
    %168 = arith.negf %167 : vector<8x128xf32>
    %169 = math.exp %168 : vector<8x128xf32>
    %cst_49 = arith.constant 1.000000e+00 : f32
    %170 = vector.broadcast %cst_49 : f32 to vector<8x128xf32>
    %171 = arith.addf %170, %169 : vector<8x128xf32>
    %172 = arith.divf %170, %171 : vector<8x128xf32>
    %173 = math.tanh %167 : vector<8x128xf32>
    %174 = vector.extract_strided_slice %172 {offsets = [0, 0], sizes = [8, 32], strides = [1, 1]} : vector<8x128xf32> to vector<8x32xf32>
    %175 = vector.extract_strided_slice %172 {offsets = [0, 32], sizes = [8, 32], strides = [1, 1]} : vector<8x128xf32> to vector<8x32xf32>
    %176 = vector.extract_strided_slice %172 {offsets = [0, 96], sizes = [8, 32], strides = [1, 1]} : vector<8x128xf32> to vector<8x32xf32>
    %177 = vector.extract_strided_slice %173 {offsets = [0, 64], sizes = [8, 32], strides = [1, 1]} : vector<8x128xf32> to vector<8x32xf32>
    %178 = arith.mulf %175, %158 : vector<8x32xf32>
    %179 = arith.mulf %174, %177 : vector<8x32xf32>
    %180 = arith.addf %178, %179 : vector<8x32xf32>
    %181 = math.tanh %180 : vector<8x32xf32>
    %182 = arith.mulf %176, %181 : vector<8x32xf32>
    %c128_50 = arith.constant 128 : index
    %c0_51 = arith.constant 0 : index
    %183 = vector.load %arg3[%c128_50, %c0_51] : memref<256x8xbf16, #tpu.memory_space<vmem>>, vector<32x8xbf16>
    %184 = arith.truncf %182 : vector<8x32xf32> to vector<8x32xbf16>
    %cst_52 = arith.constant dense<0.000000e+00> : vector<32x32xf32>
    %185 = tpu.matmul %183, %184, %cst_52 {dimension_numbers = #tpu.dot_dimension_numbers<[1], [0], [0], [1], [0, 0, 1, 1], [], []>} : vector<32x8xbf16>, vector<8x32xbf16>, vector<32x32xf32> -> vector<32x32xf32>
    %186 = arith.addf %164, %185 : vector<32x32xf32>
    %187 = vector.extract_strided_slice %28 {offsets = [40, 0], sizes = [8, 128], strides = [1, 1]} : vector<64x128xf32> to vector<8x128xf32>
    %cst_53 = arith.constant dense<0.000000e+00> : vector<8x128xf32>
    %188 = tpu.matmul %182, %5, %cst_53 {dimension_numbers = #tpu.dot_dimension_numbers<[1], [0], [0], [1], [0, 0, 1, 1], [], []>} : vector<8x32xf32>, vector<32x128xf32>, vector<8x128xf32> -> vector<8x128xf32>
    %189 = arith.addf %187, %188 : vector<8x128xf32>
    %190 = arith.negf %189 : vector<8x128xf32>
    %191 = math.exp %190 : vector<8x128xf32>
    %cst_54 = arith.constant 1.000000e+00 : f32
    %192 = vector.broadcast %cst_54 : f32 to vector<8x128xf32>
    %193 = arith.addf %192, %191 : vector<8x128xf32>
    %194 = arith.divf %192, %193 : vector<8x128xf32>
    %195 = math.tanh %189 : vector<8x128xf32>
    %196 = vector.extract_strided_slice %194 {offsets = [0, 0], sizes = [8, 32], strides = [1, 1]} : vector<8x128xf32> to vector<8x32xf32>
    %197 = vector.extract_strided_slice %194 {offsets = [0, 32], sizes = [8, 32], strides = [1, 1]} : vector<8x128xf32> to vector<8x32xf32>
    %198 = vector.extract_strided_slice %194 {offsets = [0, 96], sizes = [8, 32], strides = [1, 1]} : vector<8x128xf32> to vector<8x32xf32>
    %199 = vector.extract_strided_slice %195 {offsets = [0, 64], sizes = [8, 32], strides = [1, 1]} : vector<8x128xf32> to vector<8x32xf32>
    %200 = arith.mulf %197, %180 : vector<8x32xf32>
    %201 = arith.mulf %196, %199 : vector<8x32xf32>
    %202 = arith.addf %200, %201 : vector<8x32xf32>
    %203 = math.tanh %202 : vector<8x32xf32>
    %204 = arith.mulf %198, %203 : vector<8x32xf32>
    %c160 = arith.constant 160 : index
    %c0_55 = arith.constant 0 : index
    %205 = vector.load %arg3[%c160, %c0_55] : memref<256x8xbf16, #tpu.memory_space<vmem>>, vector<32x8xbf16>
    %206 = arith.truncf %204 : vector<8x32xf32> to vector<8x32xbf16>
    %cst_56 = arith.constant dense<0.000000e+00> : vector<32x32xf32>
    %207 = tpu.matmul %205, %206, %cst_56 {dimension_numbers = #tpu.dot_dimension_numbers<[1], [0], [0], [1], [0, 0, 1, 1], [], []>} : vector<32x8xbf16>, vector<8x32xbf16>, vector<32x32xf32> -> vector<32x32xf32>
    %208 = arith.addf %186, %207 : vector<32x32xf32>
    %209 = vector.extract_strided_slice %28 {offsets = [48, 0], sizes = [8, 128], strides = [1, 1]} : vector<64x128xf32> to vector<8x128xf32>
    %cst_57 = arith.constant dense<0.000000e+00> : vector<8x128xf32>
    %210 = tpu.matmul %204, %5, %cst_57 {dimension_numbers = #tpu.dot_dimension_numbers<[1], [0], [0], [1], [0, 0, 1, 1], [], []>} : vector<8x32xf32>, vector<32x128xf32>, vector<8x128xf32> -> vector<8x128xf32>
    %211 = arith.addf %209, %210 : vector<8x128xf32>
    %212 = arith.negf %211 : vector<8x128xf32>
    %213 = math.exp %212 : vector<8x128xf32>
    %cst_58 = arith.constant 1.000000e+00 : f32
    %214 = vector.broadcast %cst_58 : f32 to vector<8x128xf32>
    %215 = arith.addf %214, %213 : vector<8x128xf32>
    %216 = arith.divf %214, %215 : vector<8x128xf32>
    %217 = math.tanh %211 : vector<8x128xf32>
    %218 = vector.extract_strided_slice %216 {offsets = [0, 0], sizes = [8, 32], strides = [1, 1]} : vector<8x128xf32> to vector<8x32xf32>
    %219 = vector.extract_strided_slice %216 {offsets = [0, 32], sizes = [8, 32], strides = [1, 1]} : vector<8x128xf32> to vector<8x32xf32>
    %220 = vector.extract_strided_slice %216 {offsets = [0, 96], sizes = [8, 32], strides = [1, 1]} : vector<8x128xf32> to vector<8x32xf32>
    %221 = vector.extract_strided_slice %217 {offsets = [0, 64], sizes = [8, 32], strides = [1, 1]} : vector<8x128xf32> to vector<8x32xf32>
    %222 = arith.mulf %219, %202 : vector<8x32xf32>
    %223 = arith.mulf %218, %221 : vector<8x32xf32>
    %224 = arith.addf %222, %223 : vector<8x32xf32>
    %225 = math.tanh %224 : vector<8x32xf32>
    %226 = arith.mulf %220, %225 : vector<8x32xf32>
    %c192 = arith.constant 192 : index
    %c0_59 = arith.constant 0 : index
    %227 = vector.load %arg3[%c192, %c0_59] : memref<256x8xbf16, #tpu.memory_space<vmem>>, vector<32x8xbf16>
    %228 = arith.truncf %226 : vector<8x32xf32> to vector<8x32xbf16>
    %cst_60 = arith.constant dense<0.000000e+00> : vector<32x32xf32>
    %229 = tpu.matmul %227, %228, %cst_60 {dimension_numbers = #tpu.dot_dimension_numbers<[1], [0], [0], [1], [0, 0, 1, 1], [], []>} : vector<32x8xbf16>, vector<8x32xbf16>, vector<32x32xf32> -> vector<32x32xf32>
    %230 = arith.addf %208, %229 : vector<32x32xf32>
    %231 = vector.extract_strided_slice %28 {offsets = [56, 0], sizes = [8, 128], strides = [1, 1]} : vector<64x128xf32> to vector<8x128xf32>
    %cst_61 = arith.constant dense<0.000000e+00> : vector<8x128xf32>
    %232 = tpu.matmul %226, %5, %cst_61 {dimension_numbers = #tpu.dot_dimension_numbers<[1], [0], [0], [1], [0, 0, 1, 1], [], []>} : vector<8x32xf32>, vector<32x128xf32>, vector<8x128xf32> -> vector<8x128xf32>
    %233 = arith.addf %231, %232 : vector<8x128xf32>
    %234 = arith.negf %233 : vector<8x128xf32>
    %235 = math.exp %234 : vector<8x128xf32>
    %cst_62 = arith.constant 1.000000e+00 : f32
    %236 = vector.broadcast %cst_62 : f32 to vector<8x128xf32>
    %237 = arith.addf %236, %235 : vector<8x128xf32>
    %238 = arith.divf %236, %237 : vector<8x128xf32>
    %239 = math.tanh %233 : vector<8x128xf32>
    %240 = vector.extract_strided_slice %238 {offsets = [0, 0], sizes = [8, 32], strides = [1, 1]} : vector<8x128xf32> to vector<8x32xf32>
    %241 = vector.extract_strided_slice %238 {offsets = [0, 32], sizes = [8, 32], strides = [1, 1]} : vector<8x128xf32> to vector<8x32xf32>
    %242 = vector.extract_strided_slice %238 {offsets = [0, 96], sizes = [8, 32], strides = [1, 1]} : vector<8x128xf32> to vector<8x32xf32>
    %243 = vector.extract_strided_slice %239 {offsets = [0, 64], sizes = [8, 32], strides = [1, 1]} : vector<8x128xf32> to vector<8x32xf32>
    %244 = arith.mulf %241, %224 : vector<8x32xf32>
    %245 = arith.mulf %240, %243 : vector<8x32xf32>
    %246 = arith.addf %244, %245 : vector<8x32xf32>
    %247 = math.tanh %246 : vector<8x32xf32>
    %248 = arith.mulf %242, %247 : vector<8x32xf32>
    %c224 = arith.constant 224 : index
    %c0_63 = arith.constant 0 : index
    %249 = vector.load %arg3[%c224, %c0_63] : memref<256x8xbf16, #tpu.memory_space<vmem>>, vector<32x8xbf16>
    %250 = arith.truncf %248 : vector<8x32xf32> to vector<8x32xbf16>
    %cst_64 = arith.constant dense<0.000000e+00> : vector<32x32xf32>
    %251 = tpu.matmul %249, %250, %cst_64 {dimension_numbers = #tpu.dot_dimension_numbers<[1], [0], [0], [1], [0, 0, 1, 1], [], []>} : vector<32x8xbf16>, vector<8x32xbf16>, vector<32x32xf32> -> vector<32x32xf32>
    %252 = arith.addf %230, %251 : vector<32x32xf32>
    %253 = arith.truncf %252 : vector<32x32xf32> to vector<32x32xbf16>
    %cst_65 = arith.constant dense<0.000000e+00> : vector<32x128xf32>
    %254 = tpu.matmul %253, %4, %cst_65 {dimension_numbers = #tpu.dot_dimension_numbers<[1], [0], [0], [1], [0, 0, 1, 1], [], []>} : vector<32x32xbf16>, vector<32x128xbf16>, vector<32x128xf32> -> vector<32x128xf32>
    %255 = tpu.concatenate %8, %8, %8, %8 in 0 : vector<8x128xf32>, vector<8x128xf32>, vector<8x128xf32>, vector<8x128xf32> -> vector<32x128xf32>
    %256 = arith.addf %254, %255 : vector<32x128xf32>
    %c0_66 = arith.constant 0 : index
    %c0_67 = arith.constant 0 : index
    %257 = vector.load %arg6[%c0_66, %c0_67] : memref<32x128xf32, #tpu.memory_space<vmem>>, vector<32x128xf32>
    tpu.vector_store %arg6[%c0_66, %c0_67], %256 {strides = array<i32>} : memref<32x128xf32, #tpu.memory_space<vmem>>, vector<32x128xf32>,
    return
  }
  func.func @transform_0(%arg0: i32) -> (i32, i32) {
    %c0_i32 = arith.constant 0 : i32
    %c0_i32_0 = arith.constant 0 : i32
    %c0_i32_1 = arith.constant 0 : i32
    return %c0_i32, %c0_i32_0 : i32, i32
  }
  func.func @transform_1(%arg0: i32) -> (i32, i32) {
    %c0_i32 = arith.constant 0 : i32
    %c0_i32_0 = arith.constant 0 : i32
    %c0_i32_1 = arith.constant 0 : i32
    return %c0_i32, %c0_i32_0 : i32, i32
  }
  func.func @transform_2(%arg0: i32) -> (i32, i32) {
    %c0_i32 = arith.constant 0 : i32
    %c0_i32_0 = arith.constant 0 : i32
    %c0_i32_1 = arith.constant 0 : i32
    return %c0_i32, %c0_i32_0 : i32, i32
  }
  func.func @transform_3(%arg0: i32) -> (i32, i32) {
    %c0_i32 = arith.constant 0 : i32
    %c0_i32_0 = arith.constant 0 : i32
    %c0_i32_1 = arith.constant 0 : i32
    return %c0_i32, %c0_i32_0 : i32, i32
  }
  func.func @transform_4(%arg0: i32) -> (i32, i32) {
    %c0_i32 = arith.constant 0 : i32
    %c0_i32_0 = arith.constant 0 : i32
    %c0_i32_1 = arith.constant 0 : i32
    return %c0_i32, %c0_i32_0 : i32, i32
  }
  func.func @transform_5(%arg0: i32) -> (i32, i32) {
    %c0_i32 = arith.constant 0 : i32
    %c0_i32_0 = arith.constant 0 : i32
    %c0_i32_1 = arith.constant 0 : i32
    return %c0_i32, %c0_i32_0 : i32, i32
  }
}

</mosaic_0001>

<llo_original>
// kernel: _device_forward.1
$region0: #{_device_forward.1}
  #allocation0 [shape = 'u32[]', space=smem, size = 0x4, offset = 0x4, fixed_abs, tag = 'smem constant byte address 0x4 - core index']
  #allocation1 [shape = 'u32[72,128]{1,0:T(1,128)}', space=vmem, size = 0x9000, scoped, tag = 'internal scratch']
  %s0 = inlined_call_operand.vmem [shape: s32[72,1], index: 0, kind: input, shape index: {}]
  %s1 = inlined_call_operand.vmem [shape: f32[4,32], index: 1, kind: input, shape index: {}]
  %s2 = inlined_call_operand.vmem [shape: bf16[256,8], index: 2, kind: input, shape index: {}]
  %s3 = inlined_call_operand.hbm [shape: bf16[448,128], index: 3, kind: input, shape index: {}]
  %s4 = inlined_call_operand.vmem [shape: f32[56,128], index: 4, kind: input, shape index: {}]
  %s5 = inlined_call_operand.hbm [shape: f32[32,128], index: 5, kind: output, shape index: {}]
  %s6 = sld [smem:[#allocation0]]
  $region34: #{_device_forward.1} parent=0
    _
  %s8 = ssub.s32 1, %s6
  %s9 = scalar_select 0, %s8, %s6
  $region1: #{_device_forward.1} parent=0
    #allocation2 [shape = 'u8[114688]{0}', space=vmem, size = 0x1c000, scoped, tag = 'input window, operand 3, single buffered']
    #allocation3 [shape = 's32[1]{0}', space=sflag, size = 0x4, scoped, tag = 'scoped memory for _device_forward.1']
    #allocation4 [shape = 's32[1]{0}', space=sflag, size = 0x4, scoped, tag = 'scoped memory for _device_forward.1']
    #allocation5 [shape = 'u8[16384]{0}', space=vmem, size = 0x4000, scoped, tag = 'output window, operand 0, single buffered']
    %10 = vsyncpa [#allocation3], 0
    %11 = vsyncpa [#allocation4], 0
    // Predicated region
    $region2: #{_device_forward.1} parent=1 // pred_check
      _
    $region3: #{_device_forward.1} parent=1 // pred_check_branch
      %13 = sbr.rel (0) target = $region5
    $region4: #{_device_forward.1} parent=1 // pred_region
      _
    $region5: #{_device_forward.1} parent=1 // pred_fallthru
      _
    // Predicated region
    $region6: #{_device_forward.1} parent=1 // pred_check
      _
    $region7: #{_device_forward.1} parent=1 // pred_check_branch
      %15 = sbr.rel (0) target = $region9
    $region8: #{_device_forward.1} parent=1 // pred_region
      _
    $region9: #{_device_forward.1} parent=1 // pred_fallthru
      _
    // Predicated region
    $region10: #{_device_forward.1} parent=1 // pred_check
      _
    $region11: #{_device_forward.1} parent=1 // pred_check_branch
      %17 = sbr.rel (0) target = $region13
    $region12: #{_device_forward.1} parent=1 // pred_region
      _
    $region13: #{_device_forward.1} parent=1 // pred_fallthru
      _
    // Predicated region
    $region14: #{_device_forward.1} parent=1 // pred_check
      _
    $region15: #{_device_forward.1} parent=1 // pred_check_branch
      %19 = sbr.rel (0) target = $region17
    $region16: #{_device_forward.1} parent=1 // pred_region
      %21 = vsyncadd [#allocation3], 0
      %s22 = sshll.u32 %s3, 4
      %s23 = int_to_ptr.hbm [resolvable:$true] %s22
      %s24 = sshll.u32 [#allocation2], 4
      %s25 = int_to_ptr.vmem [resolvable:$true] %s24
      %30 = dma.hbm_to_vmem [thread:$0]  %s23, 3584, %s25, [#allocation3], 64, 64, 4
    $region17: #{_device_forward.1} parent=1 // pred_fallthru
      _
    // Predicated region
    $region18: #{_device_forward.1} parent=1 // pred_check
      _
    $region19: #{_device_forward.1} parent=1 // pred_check_branch
      %32 = sbr.rel (0) target = $region21
    $region20: #{_device_forward.1} parent=1 // pred_region
      _
    $region21: #{_device_forward.1} parent=1 // pred_fallthru
      _
    // Predicated region
    $region22: #{_device_forward.1} parent=1 // pred_check
      _
    $region23: #{_device_forward.1} parent=1 // pred_check_branch
      %34 = sbr.rel (0) target = $region25
    $region24: #{_device_forward.1} parent=1 // pred_region
      %36 = dma.done [#allocation3], 3584
    $region25: #{_device_forward.1} parent=1 // pred_fallthru
      _
    %v38 = vld [vmem:[#allocation2] sm:$0xf]
    %v39 = vld [vmem:[#allocation2 + $0x4] sm:$0xf]
    %v40 = vld [vmem:[#allocation2 + $0x8] sm:$0xf]
    %v41 = vld [vmem:[#allocation2 + $0xc] sm:$0xf]
    %v42 = vld [vmem:[#allocation2 + $0x10] sm:$0xf]
    %v43 = vld [vmem:[#allocation2 + $0x14] sm:$0xf]
    %v44 = vld [vmem:[#allocation2 + $0x18] sm:$0xf]
    %v45 = vld [vmem:[#allocation2 + $0x1c] sm:$0xf]
    %v46 = vld [vmem:[#allocation2 + $0x20] sm:$0xf]
    %v47 = vld [vmem:[#allocation2 + $0x24] sm:$0xf]
    %v48 = vld [vmem:[#allocation2 + $0x28] sm:$0xf]
    %v49 = vld [vmem:[#allocation2 + $0x2c] sm:$0xf]
    %v50 = vld [vmem:[#allocation2 + $0x30] sm:$0xf]
    %v51 = vld [vmem:[#allocation2 + $0x34] sm:$0xf]
    %v52 = vld [vmem:[#allocation2 + $0x38] sm:$0xf]
    %v53 = vld [vmem:[#allocation2 + $0x3c] sm:$0xf]
    %v54 = vld [vmem:[#allocation2 + $0x40] sm:$0xf]
    %v55 = vld [vmem:[#allocation2 + $0x44] sm:$0xf]
    %v56 = vld [vmem:[#allocation2 + $0x48] sm:$0xf]
    %v57 = vld [vmem:[#allocation2 + $0x4c] sm:$0xf]
    %v58 = vld [vmem:[#allocation2 + $0x50] sm:$0xf]
    %v59 = vld [vmem:[#allocation2 + $0x54] sm:$0xf]
    %v60 = vld [vmem:[#allocation2 + $0x58] sm:$0xf]
    %v61 = vld [vmem:[#allocation2 + $0x5c] sm:$0xf]
    %v62 = vld [vmem:[#allocation2 + $0x60] sm:$0xf]
    %v63 = vld [vmem:[#allocation2 + $0x64] sm:$0xf]
    %v64 = vld [vmem:[#allocation2 + $0x68] sm:$0xf]
    %v65 = vld [vmem:[#allocation2 + $0x6c] sm:$0xf]
    %v66 = vld [vmem:[#allocation2 + $0x70] sm:$0xf]
    %v67 = vld [vmem:[#allocation2 + $0x74] sm:$0xf]
    %v68 = vld [vmem:[#allocation2 + $0x78] sm:$0xf]
    %v69 = vld [vmem:[#allocation2 + $0x7c] sm:$0xf]
    %v70 = vld [vmem:[#allocation2 + $0x80] sm:$0xf]
    %v71 = vld [vmem:[#allocation2 + $0x84] sm:$0xf]
    %v72 = vld [vmem:[#allocation2 + $0x88] sm:$0xf]
    %v73 = vld [vmem:[#allocation2 + $0x8c] sm:$0xf]
    %v74 = vld [vmem:[#allocation2 + $0x90] sm:$0xf]
    %v75 = vld [vmem:[#allocation2 + $0x94] sm:$0xf]
    %v76 = vld [vmem:[#allocation2 + $0x98] sm:$0xf]
    %v77 = vld [vmem:[#allocation2 + $0x9c] sm:$0xf]
    %v78 = vld [vmem:[#allocation2 + $0xa0] sm:$0xf]
    %v79 = vld [vmem:[#allocation2 + $0xa4] sm:$0xf]
    %v80 = vld [vmem:[#allocation2 + $0xa8] sm:$0xf]
    %v81 = vld [vmem:[#allocation2 + $0xac] sm:$0xf]
    %v82 = vld [vmem:[#allocation2 + $0xb0] sm:$0xf]
    %v83 = vld [vmem:[#allocation2 + $0xb4] sm:$0xf]
    %v84 = vld [vmem:[#allocation2 + $0xb8] sm:$0xf]
    %v85 = vld [vmem:[#allocation2 + $0xbc] sm:$0xf]
    %v86 = vld [vmem:[#allocation2 + $0xc0] sm:$0xf]
    %v87 = vld [vmem:[#allocation2 + $0xc4] sm:$0xf]
    %v88 = vld [vmem:[#allocation2 + $0xc8] sm:$0xf]
    %v89 = vld [vmem:[#allocation2 + $0xcc] sm:$0xf]
    %v90 = vld [vmem:[#allocation2 + $0xd0] sm:$0xf]
    %v91 = vld [vmem:[#allocation2 + $0xd4] sm:$0xf]
    %v92 = vld [vmem:[#allocation2 + $0xd8] sm:$0xf]
    %v93 = vld [vmem:[#allocation2 + $0xdc] sm:$0xf]
    %v94 = vld [vmem:[%s4] sm:$0xff]
    %v95 = vld [vmem:[%s4 + $0x8] sm:$0xff]
    %v96 = vld [vmem:[%s4 + $0x10] sm:$0xff]
    %v97 = vld [vmem:[%s4 + $0x18] sm:$0xff]
    %v98 = vld [vmem:[%s4 + $0x20] sm:$0xff]
    %v99 = vld [vmem:[%s4 + $0x28] sm:$0xff]
    %v100 = vld [vmem:[%s4 + $0x30] sm:$0xff]
    %v101 = vld [vmem:[%s0] sm:$0xff]
    %v102 = vld [vmem:[%s0 + $0x8] sm:$0xff]
    %v103 = vld [vmem:[%s0 + $0x10] sm:$0xff]
    %v104 = vld [vmem:[%s0 + $0x18] sm:$0xff]
    %v105 = vld [vmem:[%s0 + $0x20] sm:$0xff]
    %v106 = vld [vmem:[%s0 + $0x28] sm:$0xff]
    %v107 = vld [vmem:[%s0 + $0x30] sm:$0xff]
    %v108 = vld [vmem:[%s0 + $0x38] sm:$0xff]
    %v109 = vld [vmem:[%s0 + $0x40] sm:$0xff]
    %v110 = vlaneseq
    %v111 = vand.u32 %v110, 127
    %112 = vset.pattern.permute.xlu0 0
    %113 = vperm.xlu0 %112, %v101
    %v114 = vpop.permute.xlu0 %113
    %115 = vset.pattern.permute.xlu0 0
    %116 = vperm.xlu0 %115, %v102
    %v117 = vpop.permute.xlu0 %116
    %118 = vset.pattern.permute.xlu0 0
    %119 = vperm.xlu0 %118, %v103
    %v120 = vpop.permute.xlu0 %119
    %121 = vset.pattern.permute.xlu0 0
    %122 = vperm.xlu0 %121, %v104
    %v123 = vpop.permute.xlu0 %122
    %124 = vset.pattern.permute.xlu0 0
    %125 = vperm.xlu0 %124, %v105
    %v126 = vpop.permute.xlu0 %125
    %127 = vset.pattern.permute.xlu0 0
    %128 = vperm.xlu0 %127, %v106
    %v129 = vpop.permute.xlu0 %128
    %130 = vset.pattern.permute.xlu0 0
    %131 = vperm.xlu0 %130, %v107
    %v132 = vpop.permute.xlu0 %131
    %133 = vset.pattern.permute.xlu0 0
    %134 = vperm.xlu0 %133, %v108
    %v135 = vpop.permute.xlu0 %134
    %vm136 = vcmp.eq.s32.totalorder %v114, %v111
    %vm137 = vcmp.eq.s32.totalorder %v117, %v111
    %vm138 = vcmp.eq.s32.totalorder %v120, %v111
    %vm139 = vcmp.eq.s32.totalorder %v123, %v111
    %vm140 = vcmp.eq.s32.totalorder %v126, %v111
    %vm141 = vcmp.eq.s32.totalorder %v129, %v111
    %vm142 = vcmp.eq.s32.totalorder %v132, %v111
    %vm143 = vcmp.eq.s32.totalorder %v135, %v111
    %v144 = vsel %vm136, 1.0, 0.0
    %v145 = vsel %vm137, 1.0, 0.0
    %v146 = vsel %vm138, 1.0, 0.0
    %v147 = vsel %vm139, 1.0, 0.0
    %v148 = vsel %vm140, 1.0, 0.0
    %v149 = vsel %vm141, 1.0, 0.0
    %v150 = vsel %vm142, 1.0, 0.0
    %v151 = vsel %vm143, 1.0, 0.0
    %v152 = vpack.c.bf16 %v145, %v144
    %v153 = vpack.c.bf16 %v147, %v146
    %v154 = vpack.c.bf16 %v149, %v148
    %v155 = vpack.c.bf16 %v151, %v150
    %v172 = vunpack.c.l.b16 %v38
    %v173 = vunpack.c.l.b16 %v39
    %v174 = vunpack.c.l.b16 %v40
    %v175 = vunpack.c.l.b16 %v41
    %v176 = vunpack.c.l.b16 %v42
    %v177 = vunpack.c.l.b16 %v43
    %v178 = vunpack.c.l.b16 %v44
    %v179 = vunpack.c.l.b16 %v45
    %v180 = vunpack.c.l.b16 %v46
    %v181 = vunpack.c.l.b16 %v47
    %v182 = vunpack.c.l.b16 %v48
    %v183 = vunpack.c.l.b16 %v49
    %v184 = vunpack.c.l.b16 %v50
    %v185 = vunpack.c.l.b16 %v51
    %v186 = vunpack.c.l.b16 %v52
    %v187 = vunpack.c.l.b16 %v53
    %v188 = vpack.c.b16 %v173, %v172
    %v189 = vpack.c.b16 %v175, %v174
    %v190 = vpack.c.b16 %v177, %v176
    %v191 = vpack.c.b16 %v179, %v178
    %v192 = vpack.c.b16 %v181, %v180
    %v193 = vpack.c.b16 %v183, %v182
    %v194 = vpack.c.b16 %v185, %v184
    %v195 = vpack.c.b16 %v187, %v186
    %204 = vmatpush.bf16.msra.mxu0 %v195
    %205 = vmatpush.bf16.msra.mxu0 %v194
    %206 = vmatpush.bf16.msra.mxu0 %v193
    %207 = vmatpush.bf16.msra.mxu0 %v192
    %208 = vmatpush.bf16.msra.mxu0 %v191
    %209 = vmatpush.bf16.msra.mxu0 %v190
    %210 = vmatpush.bf16.msra.mxu0 %v189
    %211 = vmatpush.bf16.msra.mxu0 %v188
    %212 = vmatmul.bf16.gmra.mxu0 %v152
    %v213 = vpop.f32.mrf.mxu0
    %v214 = vadd.f32 0.0, %v213
    %v215 = vpop.f32.mrf.mxu0
    %v216 = vadd.f32 0.0, %v215
    %217 = vmatmul.bf16.gmra.mxu0 %v153
    %v218 = vpop.f32.mrf.mxu0
    %v219 = vadd.f32 0.0, %v218
    %v220 = vpop.f32.mrf.mxu0
    %v221 = vadd.f32 0.0, %v220
    %222 = vmatmul.bf16.gmra.mxu0 %v154
    %v223 = vpop.f32.mrf.mxu0
    %v224 = vadd.f32 0.0, %v223
    %v225 = vpop.f32.mrf.mxu0
    %v226 = vadd.f32 0.0, %v225
    %227 = vmatmul.bf16.gmra.mxu0 %v155
    %v228 = vpop.f32.mrf.mxu0
    %v229 = vadd.f32 0.0, %v228
    %v230 = vpop.f32.mrf.mxu0
    %v231 = vadd.f32 0.0, %v230
    %232 = vdwg.mxu0
    %v233 = vpack.c.bf16 %v216, %v214
    %v234 = vpack.c.bf16 %v221, %v219
    %v235 = vpack.c.bf16 %v226, %v224
    %v236 = vpack.c.bf16 %v231, %v229
    %v253 = vunpack.c.l.b16 %v54
    %v254 = vunpack.c.l.b16 %v55
    %v255 = vunpack.c.l.b16 %v56
    %v256 = vunpack.c.l.b16 %v57
    %v257 = vunpack.c.l.b16 %v58
    %v258 = vunpack.c.l.b16 %v59
    %v259 = vunpack.c.l.b16 %v60
    %v260 = vunpack.c.l.b16 %v61
    %v261 = vunpack.c.l.b16 %v62
    %v262 = vunpack.c.l.b16 %v63
    %v263 = vunpack.c.l.b16 %v64
    %v264 = vunpack.c.l.b16 %v65
    %v265 = vunpack.c.l.b16 %v66
    %v266 = vunpack.c.l.b16 %v67
    %v267 = vunpack.c.l.b16 %v68
    %v268 = vunpack.c.l.b16 %v69
    %v269 = vpack.c.b16 %v254, %v253
    %v270 = vpack.c.b16 %v256, %v255
    %v271 = vpack.c.b16 %v258, %v257
    %v272 = vpack.c.b16 %v260, %v259
    %v273 = vpack.c.b16 %v262, %v261
    %v274 = vpack.c.b16 %v264, %v263
    %v275 = vpack.c.b16 %v266, %v265
    %v276 = vpack.c.b16 %v268, %v267
    %285 = vmatpush.bf16.msra.mxu0 %v276
    %286 = vmatpush.bf16.msra.mxu0 %v275
    %287 = vmatpush.bf16.msra.mxu0 %v274
    %288 = vmatpush.bf16.msra.mxu0 %v273
    %289 = vmatpush.bf16.msra.mxu0 %v272
    %290 = vmatpush.bf16.msra.mxu0 %v271
    %291 = vmatpush.bf16.msra.mxu0 %v270
    %292 = vmatpush.bf16.msra.mxu0 %v269
    %293 = vmatmul.bf16.gmra.mxu0 %v233
    %v294 = vpop.f32.mrf.mxu0
    %v295 = vadd.f32 %v99, %v294
    %v296 = vpop.f32.mrf.mxu0
    %v297 = vadd.f32 %v99, %v296
    %298 = vmatmul.bf16.gmra.mxu0 %v234
    %v299 = vpop.f32.mrf.mxu0
    %v300 = vadd.f32 %v99, %v299
    %v301 = vpop.f32.mrf.mxu0
    %v302 = vadd.f32 %v99, %v301
    %303 = vmatmul.bf16.gmra.mxu0 %v235
    %v304 = vpop.f32.mrf.mxu0
    %v305 = vadd.f32 %v99, %v304
    %v306 = vpop.f32.mrf.mxu0
    %v307 = vadd.f32 %v99, %v306
    %308 = vmatmul.bf16.gmra.mxu0 %v236
    %v309 = vpop.f32.mrf.mxu0
    %v310 = vadd.f32 %v99, %v309
    %v311 = vpop.f32.mrf.mxu0
    %v312 = vadd.f32 %v99, %v311
    %313 = vdwg.mxu0
    %v314 = vmax.f32 %v295, 0.0
    %v315 = vmax.f32 %v297, 0.0
    %v316 = vmax.f32 %v300, 0.0
    %v317 = vmax.f32 %v302, 0.0
    %v318 = vmax.f32 %v305, 0.0
    %v319 = vmax.f32 %v307, 0.0
    %v320 = vmax.f32 %v310, 0.0
    %v321 = vmax.f32 %v312, 0.0
    %v322 = vpack.c.bf16 %v315, %v314
    %v323 = vpack.c.bf16 %v317, %v316
    %v324 = vpack.c.bf16 %v319, %v318
    %v325 = vpack.c.bf16 %v321, %v320
    %v342 = vunpack.c.l.b16 %v70
    %v343 = vunpack.c.l.b16 %v71
    %v344 = vunpack.c.l.b16 %v72
    %v345 = vunpack.c.l.b16 %v73
    %v346 = vunpack.c.l.b16 %v74
    %v347 = vunpack.c.l.b16 %v75
    %v348 = vunpack.c.l.b16 %v76
    %v349 = vunpack.c.l.b16 %v77
    %v350 = vunpack.c.l.b16 %v78
    %v351 = vunpack.c.l.b16 %v79
    %v352 = vunpack.c.l.b16 %v80
    %v353 = vunpack.c.l.b16 %v81
    %v354 = vunpack.c.l.b16 %v82
    %v355 = vunpack.c.l.b16 %v83
    %v356 = vunpack.c.l.b16 %v84
    %v357 = vunpack.c.l.b16 %v85
    %v358 = vpack.c.b16 %v343, %v342
    %v359 = vpack.c.b16 %v345, %v344
    %v360 = vpack.c.b16 %v347, %v346
    %v361 = vpack.c.b16 %v349, %v348
    %v362 = vpack.c.b16 %v351, %v350
    %v363 = vpack.c.b16 %v353, %v352
    %v364 = vpack.c.b16 %v355, %v354
    %v365 = vpack.c.b16 %v357, %v356
    %374 = vmatpush.bf16.msra.mxu0 %v365
    %375 = vmatpush.bf16.msra.mxu0 %v364
    %376 = vmatpush.bf16.msra.mxu0 %v363
    %377 = vmatpush.bf16.msra.mxu0 %v362
    %378 = vmatpush.bf16.msra.mxu0 %v361
    %379 = vmatpush.bf16.msra.mxu0 %v360
    %380 = vmatpush.bf16.msra.mxu0 %v359
    %381 = vmatpush.bf16.msra.mxu0 %v358
    %382 = vmatmul.bf16.gmra.mxu0 %v322
    %v383 = vpop.f32.mrf.mxu0
    %v384 = vadd.f32 %v98, %v383
    %v385 = vpop.f32.mrf.mxu0
    %v386 = vadd.f32 %v98, %v385
    %387 = vmatmul.bf16.gmra.mxu0 %v323
    %v388 = vpop.f32.mrf.mxu0
    %v389 = vadd.f32 %v98, %v388
    %v390 = vpop.f32.mrf.mxu0
    %v391 = vadd.f32 %v98, %v390
    %392 = vmatmul.bf16.gmra.mxu0 %v324
    %v393 = vpop.f32.mrf.mxu0
    %v394 = vadd.f32 %v98, %v393
    %v395 = vpop.f32.mrf.mxu0
    %v396 = vadd.f32 %v98, %v395
    %397 = vmatmul.bf16.gmra.mxu0 %v325
    %v398 = vpop.f32.mrf.mxu0
    %v399 = vadd.f32 %v98, %v398
    %v400 = vpop.f32.mrf.mxu0
    %v401 = vadd.f32 %v98, %v400
    %402 = vdwg.mxu0
    %v403 = vld [vmem:[%s1] sm:$0xf]
    %vm404 = vcmp.eq.s32.totalorder %v109, 0
    %v405 = vsel %vm404, 1, 0
    %406 = vset.pattern.permute.xlu0 0
    %407 = vperm.xlu0 %406, %v405
    %v408 = vpop.permute.xlu0 %407
    %vm409 = vcmp.eq.s32.totalorder %v408, 1
    %v410 = vperm.slane %v403, 0
    %v411 = vsel %vm409, %v410, 0.0
    %v412 = vadd.f32 %v411, 0.0
    %vm413 = vcmp.eq.s32.totalorder %v109, 1
    %v414 = vsel %vm413, 1, 0
    %415 = vset.pattern.permute.xlu0 0
    %416 = vperm.xlu0 %415, %v414
    %v417 = vpop.permute.xlu0 %416
    %vm418 = vcmp.eq.s32.totalorder %v417, 1
    %v419 = vperm.slane %v403, 1
    %v420 = vsel %vm418, %v419, 0.0
    %v421 = vadd.f32 %v412, %v420
    %vm422 = vcmp.eq.s32.totalorder %v109, 2
    %v423 = vsel %vm422, 1, 0
    %424 = vset.pattern.permute.xlu0 0
    %425 = vperm.xlu0 %424, %v423
    %v426 = vpop.permute.xlu0 %425
    %vm427 = vcmp.eq.s32.totalorder %v426, 1
    %v428 = vperm.slane %v403, 2
    %v429 = vsel %vm427, %v428, 0.0
    %v430 = vadd.f32 %v421, %v429
    %vm431 = vcmp.eq.s32.totalorder %v109, 3
    %v432 = vsel %vm431, 1, 0
    %433 = vset.pattern.permute.xlu0 0
    %434 = vperm.xlu0 %433, %v432
    %v435 = vpop.permute.xlu0 %434
    %vm436 = vcmp.eq.s32.totalorder %v435, 1
    %v437 = vperm.slane %v403, 3
    %v438 = vsel %vm436, %v437, 0.0
    %v439 = vadd.f32 %v430, %v438
    %v440 = vpack.c.bf16 %v439, %v439
    %v445 = vunpack.c.l.b16 %v86
    %v446 = vunpack.c.l.b16 %v87
    %v447 = vunpack.c.l.b16 %v88
    %v448 = vunpack.c.l.b16 %v89
    %v449 = vpack.c.b16 %v446, %v445
    %v450 = vpack.c.b16 %v448, %v447
    %vm453 = vcmask 261120
    %v455 = vsel %vm453, %v440, 0
    %457 = vmatpush.bf16.msra.mxu0 0
    %458 = vmatpush.bf16.msra.mxu0 0
    %459 = vmatpush.bf16.msra.mxu0 0
    %460 = vmatpush.bf16.msra.mxu0 0
    %461 = vmatpush.bf16.msra.mxu0 0
    %462 = vmatpush.bf16.msra.mxu0 0
    %463 = vmatpush.bf16.msra.mxu0 %v450
    %464 = vmatpush.bf16.msra.mxu0 %v449
    %465 = vmatmul.bf16.gmra.mxu0 %v455
    %v466 = vpop.f32.mrf.mxu0
    %v467 = vadd.f32 0.0, %v466
    %v468 = vpop.f32.mrf.mxu0
    %469 = vdwg.mxu0
    %v470 = vadd.f32 %v384, %v467
    %v472 = vsel %vm453, 0.0, 0
    %474 = vmatpush.msra.mxu0 0.0
    %475 = vmatpush.msra.mxu0 0.0
    %476 = vmatpush.msra.mxu0 0.0
    %477 = vmatpush.msra.mxu0 0.0
    %478 = vmatpush.msra.mxu0 0.0
    %479 = vmatpush.msra.mxu0 0.0
    %480 = vmatpush.msra.mxu0 0.0
    %481 = vmatpush.msra.mxu0 0.0
    %482 = vmatpush.msra.mxu0 0.0
    %483 = vmatpush.msra.mxu0 0.0
    %484 = vmatpush.msra.mxu0 0.0
    %485 = vmatpush.msra.mxu0 0.0
    %486 = vmatpush.msra.mxu0 %v97
    %487 = vmatpush.msra.mxu0 %v96
    %488 = vmatpush.msra.mxu0 %v95
    %489 = vmatpush.msra.mxu0 %v94
    %490 = vmatmul.f32.gmra.mxu0 %v472
    %v491 = vpop.f32.mrf.mxu0
    %v492 = vadd.f32 0.0, %v491
    %493 = vdwg.mxu0
    %v494 = vadd.f32 %v470, %v492
    %v495 = vxor.u32 %v494, 2147483648
    %v496 = vmul.f32 %v495, 1.442695
    %v497 = vpow.pop %v496
    %v498 = vadd.f32 %v497, 1.0
    %v499 = vrcp.pop %v498
    %v500 = vmul.f32 %v498, %v499
    %v501 = vsub.f32 1.0, %v500
    %v502 = vmul.f32 %v499, %v501
    %v503 = vadd.f32 %v499, %v502
    %vm504 = vweird.f32 %v498
    %vm505 = vweird.f32 %v499
    %vm506 = vmor %vm504, %vm505
    %v507 = vsel %vm506, %v499, %v503
    %v508 = vand.u32 2147483647, %v498
    %vm509 = vcmp.eq.f32.partialorder %v508, 8.507059e+37
    %v510 = vand.u32 %v498, 2147483648
    %v511 = vor.u32 1.1754944e-38, %v510
    %v512 = vsel %vm509, %v511, %v507
    %v513 = vmul.f32 1.0, %v512
    %v514 = vtanh.pop %v494
    %v515 = vmul.f32 %v513, 0.0
    %517 = vrot.lane.b32.xlu0 %v514, 64
    %v518 = vpop.permute.xlu0 %517
    %v520 = vmul.f32 %v513, %v518
    %522 = vrot.lane.b32.xlu0 %v520, 32
    %v523 = vpop.permute.xlu0 %522
    %v525 = vadd.f32 %v515, %v523
    %v526 = vtanh.pop %v525
    %528 = vrot.lane.b32.xlu0 %v526, 64
    %v529 = vpop.permute.xlu0 %528
    %v531 = vmul.f32 %v513, %v529
    %v532 = vld [vmem:[%s2] sm:$0xf]
    %v533 = vld [vmem:[%s2 + $0x4] sm:$0xf]
    %v534 = vld [vmem:[%s2 + $0x8] sm:$0xf]
    %v535 = vld [vmem:[%s2 + $0xc] sm:$0xf]
    %v536 = vpack.c.bf16 %v531, %v531
    %538 = vrot.lane.b32.xlu0 %v531, 32
    %v539 = vpop.permute.xlu0 %538
    %v540 = vsel %vm453, %v539, 0
    %542 = vmatpush.msra.mxu0 0.0
    %543 = vmatpush.msra.mxu0 0.0
    %544 = vmatpush.msra.mxu0 0.0
    %545 = vmatpush.msra.mxu0 0.0
    %546 = vmatpush.msra.mxu0 0.0
    %547 = vmatpush.msra.mxu0 0.0
    %548 = vmatpush.msra.mxu0 0.0
    %549 = vmatpush.msra.mxu0 0.0
    %550 = vmatpush.msra.mxu0 0.0
    %551 = vmatpush.msra.mxu0 0.0
    %552 = vmatpush.msra.mxu0 0.0
    %553 = vmatpush.msra.mxu0 0.0
    %554 = vmatpush.msra.mxu0 %v97
    %555 = vmatpush.msra.mxu0 %v96
    %556 = vmatpush.msra.mxu0 %v95
    %557 = vmatpush.msra.mxu0 %v94
    %558 = vmatmul.f32.gmra.mxu0 %v540
    %v559 = vpop.f32.mrf.mxu0
    %v560 = vadd.f32 0.0, %v559
    %561 = vdwg.mxu0
    %v562 = vadd.f32 %v386, %v560
    %v563 = vxor.u32 %v562, 2147483648
    %v564 = vmul.f32 %v563, 1.442695
    %v565 = vpow.pop %v564
    %v566 = vadd.f32 %v565, 1.0
    %v567 = vrcp.pop %v566
    %v568 = vmul.f32 %v566, %v567
    %v569 = vsub.f32 1.0, %v568
    %v570 = vmul.f32 %v567, %v569
    %v571 = vadd.f32 %v567, %v570
    %vm572 = vweird.f32 %v566
    %vm573 = vweird.f32 %v567
    %vm574 = vmor %vm572, %vm573
    %v575 = vsel %vm574, %v567, %v571
    %v576 = vand.u32 2147483647, %v566
    %vm577 = vcmp.eq.f32.partialorder %v576, 8.507059e+37
    %v578 = vand.u32 %v566, 2147483648
    %v579 = vor.u32 1.1754944e-38, %v578
    %v580 = vsel %vm577, %v579, %v575
    %v581 = vmul.f32 1.0, %v580
    %v582 = vtanh.pop %v562
    %v583 = vmul.f32 %v581, %v525
    %585 = vrot.lane.b32.xlu0 %v582, 64
    %v586 = vpop.permute.xlu0 %585
    %v588 = vmul.f32 %v581, %v586
    %590 = vrot.lane.b32.xlu0 %v588, 32
    %v591 = vpop.permute.xlu0 %590
    %v593 = vadd.f32 %v583, %v591
    %v594 = vtanh.pop %v593
    %596 = vrot.lane.b32.xlu0 %v594, 64
    %v597 = vpop.permute.xlu0 %596
    %v599 = vmul.f32 %v581, %v597
    %v600 = vld [vmem:[%s2 + $0x10] sm:$0xf]
    %v601 = vld [vmem:[%s2 + $0x14] sm:$0xf]
    %v602 = vld [vmem:[%s2 + $0x18] sm:$0xf]
    %v603 = vld [vmem:[%s2 + $0x1c] sm:$0xf]
    %v604 = vpack.c.bf16 %v599, %v599
    %v609 = vunpack.c.l.b16 %v600
    %v610 = vunpack.c.l.b16 %v601
    %v611 = vunpack.c.l.b16 %v602
    %v612 = vunpack.c.l.b16 %v603
    %v613 = vpack.c.b16 %v610, %v609
    %v614 = vpack.c.b16 %v612, %v611
    %616 = vrot.lane.b32.xlu0 %v604, 32
    %v617 = vpop.permute.xlu0 %616
    %vm618 = vcmask 64512
    %v620 = vsel %vm618, %v613, 0
    %v623 = vsel %vm618, %v614, 0
    %vm625 = vcmask 1043456
    %v627 = vsel %vm625, %v617, 0
    %629 = vmatpush.bf16.msra.mxu0 0
    %630 = vmatpush.bf16.msra.mxu0 0
    %631 = vmatpush.bf16.msra.mxu0 0
    %632 = vmatpush.bf16.msra.mxu0 0
    %633 = vmatpush.bf16.msra.mxu0 0
    %634 = vmatpush.bf16.msra.mxu0 0
    %635 = vmatpush.bf16.msra.mxu0 0
    %636 = vmatpush.bf16.msra.mxu0 %v627
    %637 = vmatmul.bf16.gmra.mxu0 %v620
    %v638 = vpop.f32.mrf.mxu0
    %v639 = vadd.f32 0.0, %v638
    %v640 = vpop.f32.mrf.mxu0
    %v641 = vadd.f32 0.0, %v640
    %642 = vmatmul.bf16.gmra.mxu0 %v623
    %v643 = vpop.f32.mrf.mxu0
    %v644 = vadd.f32 0.0, %v643
    %v645 = vpop.f32.mrf.mxu0
    %v646 = vadd.f32 0.0, %v645
    %647 = vdwg.mxu0
    %v652 = vunpack.c.l.b16 %v532
    %v653 = vunpack.c.l.b16 %v533
    %v654 = vunpack.c.l.b16 %v534
    %v655 = vunpack.c.l.b16 %v535
    %v656 = vpack.c.b16 %v653, %v652
    %v657 = vpack.c.b16 %v655, %v654
    %659 = vrot.lane.b32.xlu0 %v536, 32
    %v660 = vpop.permute.xlu0 %659
    %v662 = vsel %vm618, %v656, 0
    %v665 = vsel %vm618, %v657, 0
    %v668 = vsel %vm625, %v660, 0
    %670 = vmatpush.bf16.msra.mxu0 0
    %671 = vmatpush.bf16.msra.mxu0 0
    %672 = vmatpush.bf16.msra.mxu0 0
    %673 = vmatpush.bf16.msra.mxu0 0
    %674 = vmatpush.bf16.msra.mxu0 0
    %675 = vmatpush.bf16.msra.mxu0 0
    %676 = vmatpush.bf16.msra.mxu0 0
    %677 = vmatpush.bf16.msra.mxu0 %v668
    %678 = vmatmul.bf16.gmra.mxu0 %v662
    %v679 = vpop.f32.mrf.mxu0
    %v680 = vadd.f32 %v639, %v679
    %v681 = vpop.f32.mrf.mxu0
    %v682 = vadd.f32 %v641, %v681
    %683 = vmatmul.bf16.gmra.mxu0 %v665
    %v684 = vpop.f32.mrf.mxu0
    %v685 = vadd.f32 %v644, %v684
    %v686 = vpop.f32.mrf.mxu0
    %v687 = vadd.f32 %v646, %v686
    %688 = vdwg.mxu0
    %690 = vrot.lane.b32.xlu0 %v599, 32
    %v691 = vpop.permute.xlu0 %690
    %v692 = vsel %vm453, %v691, 0
    %694 = vmatpush.msra.mxu0 0.0
    %695 = vmatpush.msra.mxu0 0.0
    %696 = vmatpush.msra.mxu0 0.0
    %697 = vmatpush.msra.mxu0 0.0
    %698 = vmatpush.msra.mxu0 0.0
    %699 = vmatpush.msra.mxu0 0.0
    %700 = vmatpush.msra.mxu0 0.0
    %701 = vmatpush.msra.mxu0 0.0
    %702 = vmatpush.msra.mxu0 0.0
    %703 = vmatpush.msra.mxu0 0.0
    %704 = vmatpush.msra.mxu0 0.0
    %705 = vmatpush.msra.mxu0 0.0
    %706 = vmatpush.msra.mxu0 %v97
    %707 = vmatpush.msra.mxu0 %v96
    %708 = vmatpush.msra.mxu0 %v95
    %709 = vmatpush.msra.mxu0 %v94
    %710 = vmatmul.f32.gmra.mxu0 %v692
    %v711 = vpop.f32.mrf.mxu0
    %v712 = vadd.f32 0.0, %v711
    %713 = vdwg.mxu0
    %v714 = vadd.f32 %v389, %v712
    %v715 = vxor.u32 %v714, 2147483648
    %v716 = vmul.f32 %v715, 1.442695
    %v717 = vpow.pop %v716
    %v718 = vadd.f32 %v717, 1.0
    %v719 = vrcp.pop %v718
    %v720 = vmul.f32 %v718, %v719
    %v721 = vsub.f32 1.0, %v720
    %v722 = vmul.f32 %v719, %v721
    %v723 = vadd.f32 %v719, %v722
    %vm724 = vweird.f32 %v718
    %vm725 = vweird.f32 %v719
    %vm726 = vmor %vm724, %vm725
    %v727 = vsel %vm726, %v719, %v723
    %v728 = vand.u32 2147483647, %v718
    %vm729 = vcmp.eq.f32.partialorder %v728, 8.507059e+37
    %v730 = vand.u32 %v718, 2147483648
    %v731 = vor.u32 1.1754944e-38, %v730
    %v732 = vsel %vm729, %v731, %v727
    %v733 = vmul.f32 1.0, %v732
    %v734 = vtanh.pop %v714
    %v735 = vmul.f32 %v733, %v593
    %737 = vrot.lane.b32.xlu0 %v734, 64
    %v738 = vpop.permute.xlu0 %737
    %v740 = vmul.f32 %v733, %v738
    %742 = vrot.lane.b32.xlu0 %v740, 32
    %v743 = vpop.permute.xlu0 %742
    %v745 = vadd.f32 %v735, %v743
    %v746 = vtanh.pop %v745
    %748 = vrot.lane.b32.xlu0 %v746, 64
    %v749 = vpop.permute.xlu0 %748
    %v751 = vmul.f32 %v733, %v749
    %v752 = vld [vmem:[%s2 + $0x20] sm:$0xf]
    %v753 = vld [vmem:[%s2 + $0x24] sm:$0xf]
    %v754 = vld [vmem:[%s2 + $0x28] sm:$0xf]
    %v755 = vld [vmem:[%s2 + $0x2c] sm:$0xf]
    %v756 = vpack.c.bf16 %v751, %v751
    %v761 = vunpack.c.l.b16 %v752
    %v762 = vunpack.c.l.b16 %v753
    %v763 = vunpack.c.l.b16 %v754
    %v764 = vunpack.c.l.b16 %v755
    %v765 = vpack.c.b16 %v762, %v761
    %v766 = vpack.c.b16 %v764, %v763
    %768 = vrot.lane.b32.xlu0 %v756, 32
    %v769 = vpop.permute.xlu0 %768
    %v771 = vsel %vm618, %v765, 0
    %v774 = vsel %vm618, %v766, 0
    %v777 = vsel %vm625, %v769, 0
    %779 = vmatpush.bf16.msra.mxu0 0
    %780 = vmatpush.bf16.msra.mxu0 0
    %781 = vmatpush.bf16.msra.mxu0 0
    %782 = vmatpush.bf16.msra.mxu0 0
    %783 = vmatpush.bf16.msra.mxu0 0
    %784 = vmatpush.bf16.msra.mxu0 0
    %785 = vmatpush.bf16.msra.mxu0 0
    %786 = vmatpush.bf16.msra.mxu0 %v777
    %787 = vmatmul.bf16.gmra.mxu0 %v771
    %v788 = vpop.f32.mrf.mxu0
    %v789 = vadd.f32 0.0, %v788
    %v790 = vpop.f32.mrf.mxu0
    %v791 = vadd.f32 0.0, %v790
    %792 = vmatmul.bf16.gmra.mxu0 %v774
    %v793 = vpop.f32.mrf.mxu0
    %v794 = vadd.f32 0.0, %v793
    %v795 = vpop.f32.mrf.mxu0
    %v796 = vadd.f32 0.0, %v795
    %797 = vdwg.mxu0
    %v798 = vadd.f32 %v680, %v789
    %v799 = vadd.f32 %v682, %v791
    %v800 = vadd.f32 %v685, %v794
    %v801 = vadd.f32 %v687, %v796
    %803 = vrot.lane.b32.xlu0 %v751, 32
    %v804 = vpop.permute.xlu0 %803
    %v805 = vsel %vm453, %v804, 0
    %807 = vmatpush.msra.mxu0 0.0
    %808 = vmatpush.msra.mxu0 0.0
    %809 = vmatpush.msra.mxu0 0.0
    %810 = vmatpush.msra.mxu0 0.0
    %811 = vmatpush.msra.mxu0 0.0
    %812 = vmatpush.msra.mxu0 0.0
    %813 = vmatpush.msra.mxu0 0.0
    %814 = vmatpush.msra.mxu0 0.0
    %815 = vmatpush.msra.mxu0 0.0
    %816 = vmatpush.msra.mxu0 0.0
    %817 = vmatpush.msra.mxu0 0.0
    %818 = vmatpush.msra.mxu0 0.0
    %819 = vmatpush.msra.mxu0 %v97
    %820 = vmatpush.msra.mxu0 %v96
    %821 = vmatpush.msra.mxu0 %v95
    %822 = vmatpush.msra.mxu0 %v94
    %823 = vmatmul.f32.gmra.mxu0 %v805
    %v824 = vpop.f32.mrf.mxu0
    %v825 = vadd.f32 0.0, %v824
    %826 = vdwg.mxu0
    %v827 = vadd.f32 %v391, %v825
    %v828 = vxor.u32 %v827, 2147483648
    %v829 = vmul.f32 %v828, 1.442695
    %v830 = vpow.pop %v829
    %v831 = vadd.f32 %v830, 1.0
    %v832 = vrcp.pop %v831
    %v833 = vmul.f32 %v831, %v832
    %v834 = vsub.f32 1.0, %v833
    %v835 = vmul.f32 %v832, %v834
    %v836 = vadd.f32 %v832, %v835
    %vm837 = vweird.f32 %v831
    %vm838 = vweird.f32 %v832
    %vm839 = vmor %vm837, %vm838
    %v840 = vsel %vm839, %v832, %v836
    %v841 = vand.u32 2147483647, %v831
    %vm842 = vcmp.eq.f32.partialorder %v841, 8.507059e+37
    %v843 = vand.u32 %v831, 2147483648
    %v844 = vor.u32 1.1754944e-38, %v843
    %v845 = vsel %vm842, %v844, %v840
    %v846 = vmul.f32 1.0, %v845
    %v847 = vtanh.pop %v827
    %v848 = vmul.f32 %v846, %v745
    %850 = vrot.lane.b32.xlu0 %v847, 64
    %v851 = vpop.permute.xlu0 %850
    %v853 = vmul.f32 %v846, %v851
    %855 = vrot.lane.b32.xlu0 %v853, 32
    %v856 = vpop.permute.xlu0 %855
    %v858 = vadd.f32 %v848, %v856
    %v859 = vtanh.pop %v858
    %861 = vrot.lane.b32.xlu0 %v859, 64
    %v862 = vpop.permute.xlu0 %861
    %v864 = vmul.f32 %v846, %v862
    %v865 = vld [vmem:[%s2 + $0x30] sm:$0xf]
    %v866 = vld [vmem:[%s2 + $0x34] sm:$0xf]
    %v867 = vld [vmem:[%s2 + $0x38] sm:$0xf]
    %v868 = vld [vmem:[%s2 + $0x3c] sm:$0xf]
    %v869 = vpack.c.bf16 %v864, %v864
    %v874 = vunpack.c.l.b16 %v865
    %v875 = vunpack.c.l.b16 %v866
    %v876 = vunpack.c.l.b16 %v867
    %v877 = vunpack.c.l.b16 %v868
    %v878 = vpack.c.b16 %v875, %v874
    %v879 = vpack.c.b16 %v877, %v876
    %881 = vrot.lane.b32.xlu0 %v869, 32
    %v882 = vpop.permute.xlu0 %881
    %v884 = vsel %vm618, %v878, 0
    %v887 = vsel %vm618, %v879, 0
    %v890 = vsel %vm625, %v882, 0
    %892 = vmatpush.bf16.msra.mxu0 0
    %893 = vmatpush.bf16.msra.mxu0 0
    %894 = vmatpush.bf16.msra.mxu0 0
    %895 = vmatpush.bf16.msra.mxu0 0
    %896 = vmatpush.bf16.msra.mxu0 0
    %897 = vmatpush.bf16.msra.mxu0 0
    %898 = vmatpush.bf16.msra.mxu0 0
    %899 = vmatpush.bf16.msra.mxu0 %v890
    %900 = vmatmul.bf16.gmra.mxu0 %v884
    %v901 = vpop.f32.mrf.mxu0
    %v902 = vadd.f32 0.0, %v901
    %v903 = vpop.f32.mrf.mxu0
    %v904 = vadd.f32 0.0, %v903
    %905 = vmatmul.bf16.gmra.mxu0 %v887
    %v906 = vpop.f32.mrf.mxu0
    %v907 = vadd.f32 0.0, %v906
    %v908 = vpop.f32.mrf.mxu0
    %v909 = vadd.f32 0.0, %v908
    %910 = vdwg.mxu0
    %v911 = vadd.f32 %v798, %v902
    %v912 = vadd.f32 %v799, %v904
    %v913 = vadd.f32 %v800, %v907
    %v914 = vadd.f32 %v801, %v909
    %916 = vrot.lane.b32.xlu0 %v864, 32
    %v917 = vpop.permute.xlu0 %916
    %v918 = vsel %vm453, %v917, 0
    %920 = vmatpush.msra.mxu0 0.0
    %921 = vmatpush.msra.mxu0 0.0
    %922 = vmatpush.msra.mxu0 0.0
    %923 = vmatpush.msra.mxu0 0.0
    %924 = vmatpush.msra.mxu0 0.0
    %925 = vmatpush.msra.mxu0 0.0
    %926 = vmatpush.msra.mxu0 0.0
    %927 = vmatpush.msra.mxu0 0.0
    %928 = vmatpush.msra.mxu0 0.0
    %929 = vmatpush.msra.mxu0 0.0
    %930 = vmatpush.msra.mxu0 0.0
    %931 = vmatpush.msra.mxu0 0.0
    %932 = vmatpush.msra.mxu0 %v97
    %933 = vmatpush.msra.mxu0 %v96
    %934 = vmatpush.msra.mxu0 %v95
    %935 = vmatpush.msra.mxu0 %v94
    %936 = vmatmul.f32.gmra.mxu0 %v918
    %v937 = vpop.f32.mrf.mxu0
    %v938 = vadd.f32 0.0, %v937
    %939 = vdwg.mxu0
    %v940 = vadd.f32 %v394, %v938
    %v941 = vxor.u32 %v940, 2147483648
    %v942 = vmul.f32 %v941, 1.442695
    %v943 = vpow.pop %v942
    %v944 = vadd.f32 %v943, 1.0
    %v945 = vrcp.pop %v944
    %v946 = vmul.f32 %v944, %v945
    %v947 = vsub.f32 1.0, %v946
    %v948 = vmul.f32 %v945, %v947
    %v949 = vadd.f32 %v945, %v948
    %vm950 = vweird.f32 %v944
    %vm951 = vweird.f32 %v945
    %vm952 = vmor %vm950, %vm951
    %v953 = vsel %vm952, %v945, %v949
    %v954 = vand.u32 2147483647, %v944
    %vm955 = vcmp.eq.f32.partialorder %v954, 8.507059e+37
    %v956 = vand.u32 %v944, 2147483648
    %v957 = vor.u32 1.1754944e-38, %v956
    %v958 = vsel %vm955, %v957, %v953
    %v959 = vmul.f32 1.0, %v958
    %v960 = vtanh.pop %v940
    %v961 = vmul.f32 %v959, %v858
    %963 = vrot.lane.b32.xlu0 %v960, 64
    %v964 = vpop.permute.xlu0 %963
    %v966 = vmul.f32 %v959, %v964
    %968 = vrot.lane.b32.xlu0 %v966, 32
    %v969 = vpop.permute.xlu0 %968
    %v971 = vadd.f32 %v961, %v969
    %v972 = vtanh.pop %v971
    %974 = vrot.lane.b32.xlu0 %v972, 64
    %v975 = vpop.permute.xlu0 %974
    %v977 = vmul.f32 %v959, %v975
    %v978 = vld [vmem:[%s2 + $0x40] sm:$0xf]
    %v979 = vld [vmem:[%s2 + $0x44] sm:$0xf]
    %v980 = vld [vmem:[%s2 + $0x48] sm:$0xf]
    %v981 = vld [vmem:[%s2 + $0x4c] sm:$0xf]
    %v982 = vpack.c.bf16 %v977, %v977
    %v987 = vunpack.c.l.b16 %v978
    %v988 = vunpack.c.l.b16 %v979
    %v989 = vunpack.c.l.b16 %v980
    %v990 = vunpack.c.l.b16 %v981
    %v991 = vpack.c.b16 %v988, %v987
    %v992 = vpack.c.b16 %v990, %v989
    %994 = vrot.lane.b32.xlu0 %v982, 32
    %v995 = vpop.permute.xlu0 %994
    %v997 = vsel %vm618, %v991, 0
    %v1000 = vsel %vm618, %v992, 0
    %v1003 = vsel %vm625, %v995, 0
    %1005 = vmatpush.bf16.msra.mxu0 0
    %1006 = vmatpush.bf16.msra.mxu0 0
    %1007 = vmatpush.bf16.msra.mxu0 0
    %1008 = vmatpush.bf16.msra.mxu0 0
    %1009 = vmatpush.bf16.msra.mxu0 0
    %1010 = vmatpush.bf16.msra.mxu0 0
    %1011 = vmatpush.bf16.msra.mxu0 0
    %1012 = vmatpush.bf16.msra.mxu0 %v1003
    %1013 = vmatmul.bf16.gmra.mxu0 %v997
    %v1014 = vpop.f32.mrf.mxu0
    %v1015 = vadd.f32 0.0, %v1014
    %v1016 = vpop.f32.mrf.mxu0
    %v1017 = vadd.f32 0.0, %v1016
    %1018 = vmatmul.bf16.gmra.mxu0 %v1000
    %v1019 = vpop.f32.mrf.mxu0
    %v1020 = vadd.f32 0.0, %v1019
    %v1021 = vpop.f32.mrf.mxu0
    %v1022 = vadd.f32 0.0, %v1021
    %1023 = vdwg.mxu0
    %v1024 = vadd.f32 %v911, %v1015
    %v1025 = vadd.f32 %v912, %v1017
    %v1026 = vadd.f32 %v913, %v1020
    %v1027 = vadd.f32 %v914, %v1022
    %1029 = vrot.lane.b32.xlu0 %v977, 32
    %v1030 = vpop.permute.xlu0 %1029
    %v1031 = vsel %vm453, %v1030, 0
    %1033 = vmatpush.msra.mxu0 0.0
    %1034 = vmatpush.msra.mxu0 0.0
    %1035 = vmatpush.msra.mxu0 0.0
    %1036 = vmatpush.msra.mxu0 0.0
    %1037 = vmatpush.msra.mxu0 0.0
    %1038 = vmatpush.msra.mxu0 0.0
    %1039 = vmatpush.msra.mxu0 0.0
    %1040 = vmatpush.msra.mxu0 0.0
    %1041 = vmatpush.msra.mxu0 0.0
    %1042 = vmatpush.msra.mxu0 0.0
    %1043 = vmatpush.msra.mxu0 0.0
    %1044 = vmatpush.msra.mxu0 0.0
    %1045 = vmatpush.msra.mxu0 %v97
    %1046 = vmatpush.msra.mxu0 %v96
    %1047 = vmatpush.msra.mxu0 %v95
    %1048 = vmatpush.msra.mxu0 %v94
    %1049 = vmatmul.f32.gmra.mxu0 %v1031
    %v1050 = vpop.f32.mrf.mxu0
    %v1051 = vadd.f32 0.0, %v1050
    %1052 = vdwg.mxu0
    %v1053 = vadd.f32 %v396, %v1051
    %v1054 = vxor.u32 %v1053, 2147483648
    %v1055 = vmul.f32 %v1054, 1.442695
    %v1056 = vpow.pop %v1055
    %v1057 = vadd.f32 %v1056, 1.0
    %v1058 = vrcp.pop %v1057
    %v1059 = vmul.f32 %v1057, %v1058
    %v1060 = vsub.f32 1.0, %v1059
    %v1061 = vmul.f32 %v1058, %v1060
    %v1062 = vadd.f32 %v1058, %v1061
    %vm1063 = vweird.f32 %v1057
    %vm1064 = vweird.f32 %v1058
    %vm1065 = vmor %vm1063, %vm1064
    %v1066 = vsel %vm1065, %v1058, %v1062
    %v1067 = vand.u32 2147483647, %v1057
    %vm1068 = vcmp.eq.f32.partialorder %v1067, 8.507059e+37
    %v1069 = vand.u32 %v1057, 2147483648
    %v1070 = vor.u32 1.1754944e-38, %v1069
    %v1071 = vsel %vm1068, %v1070, %v1066
    %v1072 = vmul.f32 1.0, %v1071
    %v1073 = vtanh.pop %v1053
    %v1074 = vmul.f32 %v1072, %v971
    %1076 = vrot.lane.b32.xlu0 %v1073, 64
    %v1077 = vpop.permute.xlu0 %1076
    %v1079 = vmul.f32 %v1072, %v1077
    %1081 = vrot.lane.b32.xlu0 %v1079, 32
    %v1082 = vpop.permute.xlu0 %1081
    %v1084 = vadd.f32 %v1074, %v1082
    %v1085 = vtanh.pop %v1084
    %1087 = vrot.lane.b32.xlu0 %v1085, 64
    %v1088 = vpop.permute.xlu0 %1087
    %v1090 = vmul.f32 %v1072, %v1088
    %v1091 = vld [vmem:[%s2 + $0x50] sm:$0xf]
    %v1092 = vld [vmem:[%s2 + $0x54] sm:$0xf]
    %v1093 = vld [vmem:[%s2 + $0x58] sm:$0xf]
    %v1094 = vld [vmem:[%s2 + $0x5c] sm:$0xf]
    %v1095 = vpack.c.bf16 %v1090, %v1090
    %v1100 = vunpack.c.l.b16 %v1091
    %v1101 = vunpack.c.l.b16 %v1092
    %v1102 = vunpack.c.l.b16 %v1093
    %v1103 = vunpack.c.l.b16 %v1094
    %v1104 = vpack.c.b16 %v1101, %v1100
    %v1105 = vpack.c.b16 %v1103, %v1102
    %1107 = vrot.lane.b32.xlu0 %v1095, 32
    %v1108 = vpop.permute.xlu0 %1107
    %v1110 = vsel %vm618, %v1104, 0
    %v1113 = vsel %vm618, %v1105, 0
    %v1116 = vsel %vm625, %v1108, 0
    %1118 = vmatpush.bf16.msra.mxu0 0
    %1119 = vmatpush.bf16.msra.mxu0 0
    %1120 = vmatpush.bf16.msra.mxu0 0
    %1121 = vmatpush.bf16.msra.mxu0 0
    %1122 = vmatpush.bf16.msra.mxu0 0
    %1123 = vmatpush.bf16.msra.mxu0 0
    %1124 = vmatpush.bf16.msra.mxu0 0
    %1125 = vmatpush.bf16.msra.mxu0 %v1116
    %1126 = vmatmul.bf16.gmra.mxu0 %v1110
    %v1127 = vpop.f32.mrf.mxu0
    %v1128 = vadd.f32 0.0, %v1127
    %v1129 = vpop.f32.mrf.mxu0
    %v1130 = vadd.f32 0.0, %v1129
    %1131 = vmatmul.bf16.gmra.mxu0 %v1113
    %v1132 = vpop.f32.mrf.mxu0
    %v1133 = vadd.f32 0.0, %v1132
    %v1134 = vpop.f32.mrf.mxu0
    %v1135 = vadd.f32 0.0, %v1134
    %1136 = vdwg.mxu0
    %v1137 = vadd.f32 %v1024, %v1128
    %v1138 = vadd.f32 %v1025, %v1130
    %v1139 = vadd.f32 %v1026, %v1133
    %v1140 = vadd.f32 %v1027, %v1135
    %1142 = vrot.lane.b32.xlu0 %v1090, 32
    %v1143 = vpop.permute.xlu0 %1142
    %v1144 = vsel %vm453, %v1143, 0
    %1146 = vmatpush.msra.mxu0 0.0
    %1147 = vmatpush.msra.mxu0 0.0
    %1148 = vmatpush.msra.mxu0 0.0
    %1149 = vmatpush.msra.mxu0 0.0
    %1150 = vmatpush.msra.mxu0 0.0
    %1151 = vmatpush.msra.mxu0 0.0
    %1152 = vmatpush.msra.mxu0 0.0
    %1153 = vmatpush.msra.mxu0 0.0
    %1154 = vmatpush.msra.mxu0 0.0
    %1155 = vmatpush.msra.mxu0 0.0
    %1156 = vmatpush.msra.mxu0 0.0
    %1157 = vmatpush.msra.mxu0 0.0
    %1158 = vmatpush.msra.mxu0 %v97
    %1159 = vmatpush.msra.mxu0 %v96
    %1160 = vmatpush.msra.mxu0 %v95
    %1161 = vmatpush.msra.mxu0 %v94
    %1162 = vmatmul.f32.gmra.mxu0 %v1144
    %v1163 = vpop.f32.mrf.mxu0
    %v1164 = vadd.f32 0.0, %v1163
    %1165 = vdwg.mxu0
    %v1166 = vadd.f32 %v399, %v1164
    %v1167 = vxor.u32 %v1166, 2147483648
    %v1168 = vmul.f32 %v1167, 1.442695
    %v1169 = vpow.pop %v1168
    %v1170 = vadd.f32 %v1169, 1.0
    %v1171 = vrcp.pop %v1170
    %v1172 = vmul.f32 %v1170, %v1171
    %v1173 = vsub.f32 1.0, %v1172
    %v1174 = vmul.f32 %v1171, %v1173
    %v1175 = vadd.f32 %v1171, %v1174
    %vm1176 = vweird.f32 %v1170
    %vm1177 = vweird.f32 %v1171
    %vm1178 = vmor %vm1176, %vm1177
    %v1179 = vsel %vm1178, %v1171, %v1175
    %v1180 = vand.u32 2147483647, %v1170
    %vm1181 = vcmp.eq.f32.partialorder %v1180, 8.507059e+37
    %v1182 = vand.u32 %v1170, 2147483648
    %v1183 = vor.u32 1.1754944e-38, %v1182
    %v1184 = vsel %vm1181, %v1183, %v1179
    %v1185 = vmul.f32 1.0, %v1184
    %v1186 = vtanh.pop %v1166
    %v1187 = vmul.f32 %v1185, %v1084
    %1189 = vrot.lane.b32.xlu0 %v1186, 64
    %v1190 = vpop.permute.xlu0 %1189
    %v1192 = vmul.f32 %v1185, %v1190
    %1194 = vrot.lane.b32.xlu0 %v1192, 32
    %v1195 = vpop.permute.xlu0 %1194
    %v1197 = vadd.f32 %v1187, %v1195
    %v1198 = vtanh.pop %v1197
    %1200 = vrot.lane.b32.xlu0 %v1198, 64
    %v1201 = vpop.permute.xlu0 %1200
    %v1203 = vmul.f32 %v1185, %v1201
    %v1204 = vld [vmem:[%s2 + $0x60] sm:$0xf]
    %v1205 = vld [vmem:[%s2 + $0x64] sm:$0xf]
    %v1206 = vld [vmem:[%s2 + $0x68] sm:$0xf]
    %v1207 = vld [vmem:[%s2 + $0x6c] sm:$0xf]
    %v1208 = vpack.c.bf16 %v1203, %v1203
    %v1213 = vunpack.c.l.b16 %v1204
    %v1214 = vunpack.c.l.b16 %v1205
    %v1215 = vunpack.c.l.b16 %v1206
    %v1216 = vunpack.c.l.b16 %v1207
    %v1217 = vpack.c.b16 %v1214, %v1213
    %v1218 = vpack.c.b16 %v1216, %v1215
    %1220 = vrot.lane.b32.xlu0 %v1208, 32
    %v1221 = vpop.permute.xlu0 %1220
    %v1223 = vsel %vm618, %v1217, 0
    %v1226 = vsel %vm618, %v1218, 0
    %v1229 = vsel %vm625, %v1221, 0
    %1231 = vmatpush.bf16.msra.mxu0 0
    %1232 = vmatpush.bf16.msra.mxu0 0
    %1233 = vmatpush.bf16.msra.mxu0 0
    %1234 = vmatpush.bf16.msra.mxu0 0
    %1235 = vmatpush.bf16.msra.mxu0 0
    %1236 = vmatpush.bf16.msra.mxu0 0
    %1237 = vmatpush.bf16.msra.mxu0 0
    %1238 = vmatpush.bf16.msra.mxu0 %v1229
    %1239 = vmatmul.bf16.gmra.mxu0 %v1223
    %v1240 = vpop.f32.mrf.mxu0
    %v1241 = vadd.f32 0.0, %v1240
    %v1242 = vpop.f32.mrf.mxu0
    %v1243 = vadd.f32 0.0, %v1242
    %1244 = vmatmul.bf16.gmra.mxu0 %v1226
    %v1245 = vpop.f32.mrf.mxu0
    %v1246 = vadd.f32 0.0, %v1245
    %v1247 = vpop.f32.mrf.mxu0
    %v1248 = vadd.f32 0.0, %v1247
    %1249 = vdwg.mxu0
    %v1250 = vadd.f32 %v1137, %v1241
    %v1251 = vadd.f32 %v1138, %v1243
    %v1252 = vadd.f32 %v1139, %v1246
    %v1253 = vadd.f32 %v1140, %v1248
    %1255 = vrot.lane.b32.xlu0 %v1203, 32
    %v1256 = vpop.permute.xlu0 %1255
    %v1257 = vsel %vm453, %v1256, 0
    %1259 = vmatpush.msra.mxu0 0.0
    %1260 = vmatpush.msra.mxu0 0.0
    %1261 = vmatpush.msra.mxu0 0.0
    %1262 = vmatpush.msra.mxu0 0.0
    %1263 = vmatpush.msra.mxu0 0.0
    %1264 = vmatpush.msra.mxu0 0.0
    %1265 = vmatpush.msra.mxu0 0.0
    %1266 = vmatpush.msra.mxu0 0.0
    %1267 = vmatpush.msra.mxu0 0.0
    %1268 = vmatpush.msra.mxu0 0.0
    %1269 = vmatpush.msra.mxu0 0.0
    %1270 = vmatpush.msra.mxu0 0.0
    %1271 = vmatpush.msra.mxu0 %v97
    %1272 = vmatpush.msra.mxu0 %v96
    %1273 = vmatpush.msra.mxu0 %v95
    %1274 = vmatpush.msra.mxu0 %v94
    %1275 = vmatmul.f32.gmra.mxu0 %v1257
    %v1276 = vpop.f32.mrf.mxu0
    %v1277 = vadd.f32 0.0, %v1276
    %1278 = vdwg.mxu0
    %v1279 = vadd.f32 %v401, %v1277
    %v1280 = vxor.u32 %v1279, 2147483648
    %v1281 = vmul.f32 %v1280, 1.442695
    %v1282 = vpow.pop %v1281
    %v1283 = vadd.f32 %v1282, 1.0
    %v1284 = vrcp.pop %v1283
    %v1285 = vmul.f32 %v1283, %v1284
    %v1286 = vsub.f32 1.0, %v1285
    %v1287 = vmul.f32 %v1284, %v1286
    %v1288 = vadd.f32 %v1284, %v1287
    %vm1289 = vweird.f32 %v1283
    %vm1290 = vweird.f32 %v1284
    %vm1291 = vmor %vm1289, %vm1290
    %v1292 = vsel %vm1291, %v1284, %v1288
    %v1293 = vand.u32 2147483647, %v1283
    %vm1294 = vcmp.eq.f32.partialorder %v1293, 8.507059e+37
    %v1295 = vand.u32 %v1283, 2147483648
    %v1296 = vor.u32 1.1754944e-38, %v1295
    %v1297 = vsel %vm1294, %v1296, %v1292
    %v1298 = vmul.f32 1.0, %v1297
    %v1299 = vtanh.pop %v1279
    %v1300 = vmul.f32 %v1298, %v1197
    %1302 = vrot.lane.b32.xlu0 %v1299, 64
    %v1303 = vpop.permute.xlu0 %1302
    %v1305 = vmul.f32 %v1298, %v1303
    %1307 = vrot.lane.b32.xlu0 %v1305, 32
    %v1308 = vpop.permute.xlu0 %1307
    %v1310 = vadd.f32 %v1300, %v1308
    %v1311 = vtanh.pop %v1310
    %1313 = vrot.lane.b32.xlu0 %v1311, 64
    %v1314 = vpop.permute.xlu0 %1313
    %v1316 = vmul.f32 %v1298, %v1314
    %v1317 = vld [vmem:[%s2 + $0x70] sm:$0xf]
    %v1318 = vld [vmem:[%s2 + $0x74] sm:$0xf]
    %v1319 = vld [vmem:[%s2 + $0x78] sm:$0xf]
    %v1320 = vld [vmem:[%s2 + $0x7c] sm:$0xf]
    %v1321 = vpack.c.bf16 %v1316, %v1316
    %v1326 = vunpack.c.l.b16 %v1317
    %v1327 = vunpack.c.l.b16 %v1318
    %v1328 = vunpack.c.l.b16 %v1319
    %v1329 = vunpack.c.l.b16 %v1320
    %v1330 = vpack.c.b16 %v1327, %v1326
    %v1331 = vpack.c.b16 %v1329, %v1328
    %1333 = vrot.lane.b32.xlu0 %v1321, 32
    %v1334 = vpop.permute.xlu0 %1333
    %v1336 = vsel %vm618, %v1330, 0
    %v1339 = vsel %vm618, %v1331, 0
    %v1342 = vsel %vm625, %v1334, 0
    %1344 = vmatpush.bf16.msra.mxu0 0
    %1345 = vmatpush.bf16.msra.mxu0 0
    %1346 = vmatpush.bf16.msra.mxu0 0
    %1347 = vmatpush.bf16.msra.mxu0 0
    %1348 = vmatpush.bf16.msra.mxu0 0
    %1349 = vmatpush.bf16.msra.mxu0 0
    %1350 = vmatpush.bf16.msra.mxu0 0
    %1351 = vmatpush.bf16.msra.mxu0 %v1342
    %1352 = vmatmul.bf16.gmra.mxu0 %v1336
    %v1353 = vpop.f32.mrf.mxu0
    %v1354 = vadd.f32 0.0, %v1353
    %v1355 = vpop.f32.mrf.mxu0
    %v1356 = vadd.f32 0.0, %v1355
    %1357 = vmatmul.bf16.gmra.mxu0 %v1339
    %v1358 = vpop.f32.mrf.mxu0
    %v1359 = vadd.f32 0.0, %v1358
    %v1360 = vpop.f32.mrf.mxu0
    %v1361 = vadd.f32 0.0, %v1360
    %1362 = vdwg.mxu0
    %v1363 = vadd.f32 %v1250, %v1354
    %v1364 = vadd.f32 %v1251, %v1356
    %v1365 = vadd.f32 %v1252, %v1359
    %v1366 = vadd.f32 %v1253, %v1361
    %v1367 = vpack.c.bf16 %v1364, %v1363
    %v1368 = vpack.c.bf16 %v1366, %v1365
    %v1373 = vunpack.c.l.b16 %v90
    %v1374 = vunpack.c.l.b16 %v91
    %v1375 = vunpack.c.l.b16 %v92
    %v1376 = vunpack.c.l.b16 %v93
    %v1377 = vpack.c.b16 %v1374, %v1373
    %v1378 = vpack.c.b16 %v1376, %v1375
    %v1382 = vsel %vm453, %v1367, 0
    %v1385 = vsel %vm453, %v1368, 0
    %1387 = vmatpush.bf16.msra.mxu0 0
    %1388 = vmatpush.bf16.msra.mxu0 0
    %1389 = vmatpush.bf16.msra.mxu0 0
    %1390 = vmatpush.bf16.msra.mxu0 0
    %1391 = vmatpush.bf16.msra.mxu0 0
    %1392 = vmatpush.bf16.msra.mxu0 0
    %1393 = vmatpush.bf16.msra.mxu0 %v1378
    %1394 = vmatpush.bf16.msra.mxu0 %v1377
    %1395 = vmatmul.bf16.gmra.mxu0 %v1382
    %v1396 = vpop.f32.mrf.mxu0
    %v1397 = vadd.f32 %v100, %v1396
    %v1398 = vpop.f32.mrf.mxu0
    %v1399 = vadd.f32 %v100, %v1398
    %1400 = vmatmul.bf16.gmra.mxu0 %v1385
    %v1401 = vpop.f32.mrf.mxu0
    %v1402 = vadd.f32 %v100, %v1401
    %v1403 = vpop.f32.mrf.mxu0
    %v1404 = vadd.f32 %v100, %v1403
    %1405 = vdwg.mxu0
    %1406 = vst [vmem:[#allocation5] sm:$0xff] %v1397
    %1407 = vst [vmem:[#allocation5 + $0x8] sm:$0xff] %v1399
    %1408 = vst [vmem:[#allocation5 + $0x10] sm:$0xff] %v1402
    %1409 = vst [vmem:[#allocation5 + $0x18] sm:$0xff] %v1404
    // Predicated region
    $region26: #{_device_forward.1} parent=1 // pred_check
      _
    $region27: #{_device_forward.1} parent=1 // pred_check_branch
      %1411 = sbr.rel (0) target = $region29
    $region28: #{_device_forward.1} parent=1 // pred_region
      %1413 = vsyncadd [#allocation4], 0
      %s1414 = sshll.u32 [#allocation5], 4
      %s1415 = int_to_ptr.vmem [resolvable:$true] %s1414
      %s1416 = sshll.u32 %s5, 4
      %s1417 = int_to_ptr.hbm [resolvable:$true] %s1416
      %1422 = dma.vmem_to_hbm [thread:$0]  %s1415, 512, %s1417, [#allocation4], 128, 128, 8
    $region29: #{_device_forward.1} parent=1 // pred_fallthru
      _
    // Predicated region
    $region30: #{_device_forward.1} parent=1 // pred_check
      _
    $region31: #{_device_forward.1} parent=1 // pred_check_branch
      %1424 = sbr.rel (0) target = $region33
    $region32: #{_device_forward.1} parent=1 // pred_region
      %1426 = dma.done [#allocation4], 512
    $region33: #{_device_forward.1} parent=1 // pred_fallthru
      _
    %1427 = vsyncpa [#allocation3], 1
    %1428 = vsyncpa [#allocation4], 1

</llo_original>
